<compile_context>
chip_gen: v7x
topology: tpu7x:2x2x1
jax: 0.10.0
libtpu: 0.0.40
codegen_flags: <defaults>
</compile_context>

<pallas_src>
import functools

import jax
import jax.numpy as jnp
from jax.experimental import pallas as pl
from jax.experimental.pallas import tpu as pltpu

IN_CHANNELS = 4
NUM_ACTIONS = 6
CONV_OUT = 16
KH = KW = 3
H_IN = W_IN = 10            # implied by fcpre(1024): 16 * 8 * 8
H_OUT = H_IN - KH + 1       # 8
W_OUT = W_IN - KW + 1       # 8
P = H_OUT * W_OUT           # 64 spatial positions
K = IN_CHANNELS * KH * KW   # 36 patch size

_VMEM = pl.BlockSpec(memory_space=pltpu.MemorySpace.VMEM)


# ----------------------------- Pallas kernel -------------------------------

def _fused_kernel(pT_ref, c_ref, wcT_ref, w1r_ref, w2T_ref, w3T_ref, sm_ref,
                  o_ref, *, batch):
    """Whole forward: conv1+relu -> fcpre*fca -> fcpost -> tconv1+relu -> tconv2."""
    f32 = jnp.float32
    bf16 = jnp.bfloat16

    # Small-operand slab (f32), one DMA descriptor for all of these.
    b1 = sm_ref[0:1, :]            # (1, 256) fcpre bias
    ba = sm_ref[1:2, :]            # (1, 256) fca bias
    b2 = sm_ref[2:3, 0:128]        # (1, 128) fcpost bias
    b3 = sm_ref[3:4, 0:64]         # (1, 64)  tconv1 bias
    w4 = sm_ref[4:5, 0:64]         # (1, 64)  tconv2 weight row
    b4 = sm_ref[5:6, 0:1]          # (1, 1)   tconv2 bias
    waT = sm_ref[8:14, :]          # (6, 256) fca weight (transposed)

    # conv1 + relu; bias is folded in via the ones-row appended to pT.
    # h stays in registers (no VMEM scratch).  B is tiny & static -> unrolled.
    wc = wcT_ref[...]                                               # (16, 37) bf16
    hs = []
    for b in range(batch):
        hb = jnp.dot(wc, pT_ref[b], preferred_element_type=f32)     # (16, 64) f32
        hs.append(jnp.maximum(hb, 0.0))

    # fcpre: co-outer / batch-in-M.  Each (64,256) w1r slab is pushed to the
    # MXU exactly once; 4 independent partial accumulators break the add chain.
    # (w1r[co] holds fcpre_w columns co*64..co*64+63 -> matches the PyTorch
    # NCHW flatten c*64 + p exactly, no in-kernel reshape.)
    parts = [None, None, None, None]
    for co in range(CONV_OUT):
        h_co = jnp.concatenate([hs[b][co:co + 1, :] for b in range(batch)],
                               axis=0)                              # (B, 64) f32
        d = jnp.dot(h_co.astype(bf16), w1r_ref[co],
                    preferred_element_type=f32)                     # (B, 256) f32
        slot = co % 4
        parts[slot] = d if parts[slot] is None else parts[slot] + d
    y = (parts[0] + parts[1]) + (parts[2] + parts[3]) + b1          # (B, 256)

    # fca gate (tiny matmul; keep everything f32).
    a = jnp.dot(c_ref[...], waT, preferred_element_type=f32) + ba   # (B, 256)
    y = y * a

    # fcpost.
    y = jnp.dot(y.astype(bf16), w2T_ref[...],
                preferred_element_type=f32) + b2                    # (B, 128)

    # tconv1 + relu.
    y = jnp.maximum(
        jnp.dot(y.astype(bf16), w3T_ref[...],
                preferred_element_type=f32) + b3, 0.0)              # (B, 64)

    # tconv2 (64 -> 1) as a lane reduction instead of a 1-wide matmul.
    o_ref[...] = jnp.sum(y * w4, axis=-1, keepdims=True) + b4       # (B, 1)


# ------------------------------- glue / host --------------------------------

def _extract_patches_T(x):
    """(B, C, 10, 10) -> (B, 36, 64) with k = c*9 + i*3 + j and p = h*8 + w.

    Nine static slices + stack: cheap fused slices under jit, no XLA gather.
    """
    B = x.shape[0]
    slabs = [x[:, :, i:i + H_OUT, j:j + W_OUT]
             for i in range(KH) for j in range(KW)]      # each (B, C, 8, 8)
    g = jnp.stack(slabs, axis=2)                         # (B, C, 9, 8, 8)
    return g.reshape(B, K, P)


def prepare_params(params):
    """One-time weight re-layout + bf16 cast + small-operand packing."""
    # conv: (16,4,3,3) -> (16,36); bias folded in as column 36 (the wrapper
    # appends a ones-row to the patch matrix).
    wcT = params["conv_w"].reshape(CONV_OUT, K)
    wcT_aug = jnp.concatenate([wcT, params["conv_b"].reshape(CONV_OUT, 1)],
                              axis=1)                                 # (16, 37)

    # fcpre_w is (256, 1024) with column index co*64 + p (NCHW flatten);
    # re-layout to (16, 64, 256) so the kernel contracts per conv channel.
    w1r = jnp.transpose(params["fcpre_w"].reshape(256, CONV_OUT, P),
                        (1, 2, 0))                                    # (16, 64, 256)

    # All remaining small operands packed into one (8,128)-aligned f32 slab.
    smalls = jnp.zeros((16, 256), jnp.float32)
    smalls = smalls.at[0, :].set(params["fcpre_b"])
    smalls = smalls.at[1, :].set(params["fca_b"])
    smalls = smalls.at[2, :128].set(params["fcpost_b"])
    smalls = smalls.at[3, :64].set(params["t1_b"])
    smalls = smalls.at[4, :64].set(params["t2_w"].reshape(64))
    smalls = smalls.at[5, 0].set(params["t2_b"][0])
    smalls = smalls.at[8:14, :].set(params["fca_w"].T)

    return dict(
        wcT=wcT_aug.astype(jnp.bfloat16),                 # (16, 37)   bf16
        w1r=w1r.astype(jnp.bfloat16),                     # (16,64,256) bf16
        w2T=params["fcpost_w"].T.astype(jnp.bfloat16),    # (256, 128) bf16
        w3T=params["t1_w"].T.astype(jnp.bfloat16),        # (128, 64)  bf16
        smalls=smalls,                                    # (16, 256)  f32
    )


@jax.jit
def small_disc_net_forward(x, c, prep):
    B = x.shape[0]
    pT = _extract_patches_T(x)                                        # (B, 36, 64)
    ones = jnp.ones((B, 1, P), pT.dtype)                              # conv-bias row
    pT = jnp.concatenate([pT, ones], axis=1).astype(jnp.bfloat16)     # (B, 37, 64)
    kernel = functools.partial(_fused_kernel, batch=B)
    return pl.pallas_call(
        kernel,
        out_shape=jax.ShapeDtypeStruct((B, 1), jnp.float32),
        in_specs=[_VMEM] * 7,
        out_specs=_VMEM,
    )(pT, c, prep["wcT"], prep["w1r"], prep["w2T"], prep["w3T"], prep["smalls"])


# ------------------------------ init / reference ----------------------------

def init_params(key):
    ks = jax.random.split(key, 12)

    def uni(k, shape, fan_in):
        bound = 1.0 / (fan_in ** 0.5)
        return jax.random.uniform(k, shape, jnp.float32, -bound, bound)

    return dict(
        conv_w=uni(ks[0], (CONV_OUT, IN_CHANNELS, KH, KW), K),
        conv_b=uni(ks[1], (CONV_OUT,), K),
        fcpre_w=uni(ks[2], (256, 1024), 1024),
        fcpre_b=uni(ks[3], (256,), 1024),
        fca_w=uni(ks[4], (256, NUM_ACTIONS), NUM_ACTIONS),
        fca_b=uni(ks[5], (256,), NUM_ACTIONS),
        fcpost_w=uni(ks[6], (128, 256), 256),
        fcpost_b=uni(ks[7], (128,), 256),
        t1_w=uni(ks[8], (64, 128), 128),
        t1_b=uni(ks[9], (64,), 128),
        t2_w=uni(ks[10], (1, 64), 64),
        t2_b=uni(ks[11], (1,), 64),
    )


def reference_forward(x, c, params):
    """Pure-JAX f32 replica of the PyTorch forward, for verification."""
    y = jax.lax.conv_general_dilated(
        x, params["conv_w"], window_strides=(1, 1), padding="VALID",
        dimension_numbers=("NCHW", "OIHW", "NCHW"))
    y = jax.nn.relu(y + params["conv_b"][None, :, None, None])
    y = y.reshape(-1, 1024)                    # NCHW flatten: c*64 + p
    y = y @ params["fcpre_w"].T + params["fcpre_b"]
    a = c @ params["fca_w"].T + params["fca_b"]
    y = y * a
    y = y @ params["fcpost_w"].T + params["fcpost_b"]
    y = jax.nn.relu(y @ params["t1_w"].T + params["t1_b"])
    y = y @ params["t2_w"].T + params["t2_b"]
    return y


if __name__ == "__main__":
    key = jax.random.PRNGKey(0)
    kx, kp = jax.random.split(key)

    B = 2
    x = jax.random.normal(kx, (B, IN_CHANNELS, H_IN, W_IN), jnp.float32)
    c = jax.nn.one_hot(jnp.array([1, 4]), NUM_ACTIONS, dtype=jnp.float32)
    params = init_params(kp)

    prep = jax.block_until_ready(prepare_params(params))   # one-time weight prep

    out = jax.block_until_ready(small_disc_net_forward(x, c, prep))
    ref = jax.block_until_ready(reference_forward(x, c, params))

    assert out.shape == (B, 1)
    # Weights are bf16 in the kernel (f32 accumulation) -> tolerance loosened
    # vs. the pure-f32 reference.
    assert jnp.allclose(out, ref, atol=2e-2, rtol=2e-2), (out, ref)

    print("KERNEL_OK")
</pallas_src>

<mosaic_0001>
module attributes {stable_mosaic.version = 11 : i64} {
  func.func @_fused_kernel(%arg0: memref<2x37x64xbf16, #tpu.memory_space<vmem>>, %arg1: memref<2x6xf32, #tpu.memory_space<vmem>>, %arg2: memref<16x37xbf16, #tpu.memory_space<vmem>>, %arg3: memref<16x64x256xbf16, #tpu.memory_space<vmem>>, %arg4: memref<256x128xbf16, #tpu.memory_space<vmem>>, %arg5: memref<128x64xbf16, #tpu.memory_space<vmem>>, %arg6: memref<16x256xf32, #tpu.memory_space<vmem>>, %arg7: memref<2x1xf32, #tpu.memory_space<vmem>>) attributes {dimension_semantics = [], scalar_prefetch = 0 : i64, scratch_operands = 0 : i64, tpu.core_type = #tpu.core_type<tc>} {
    %c0 = arith.constant 0 : index
    %c0_0 = arith.constant 0 : index
    %0 = vector.load %arg6[%c0, %c0_0] : memref<16x256xf32, #tpu.memory_space<vmem>>, vector<1x256xf32>
    %c1 = arith.constant 1 : index
    %c0_1 = arith.constant 0 : index
    %1 = vector.load %arg6[%c1, %c0_1] : memref<16x256xf32, #tpu.memory_space<vmem>>, vector<1x256xf32>
    %c2 = arith.constant 2 : index
    %c0_2 = arith.constant 0 : index
    %2 = vector.load %arg6[%c2, %c0_2] : memref<16x256xf32, #tpu.memory_space<vmem>>, vector<1x128xf32>
    %c3 = arith.constant 3 : index
    %c0_3 = arith.constant 0 : index
    %3 = vector.load %arg6[%c3, %c0_3] : memref<16x256xf32, #tpu.memory_space<vmem>>, vector<1x64xf32>
    %c4 = arith.constant 4 : index
    %c0_4 = arith.constant 0 : index
    %4 = vector.load %arg6[%c4, %c0_4] : memref<16x256xf32, #tpu.memory_space<vmem>>, vector<1x64xf32>
    %c5 = arith.constant 5 : index
    %c0_5 = arith.constant 0 : index
    %5 = vector.load %arg6[%c5, %c0_5] : memref<16x256xf32, #tpu.memory_space<vmem>>, vector<1x1xf32>
    %c8 = arith.constant 8 : index
    %c0_6 = arith.constant 0 : index
    %6 = vector.load %arg6[%c8, %c0_6] : memref<16x256xf32, #tpu.memory_space<vmem>>, vector<6x256xf32>
    %c0_7 = arith.constant 0 : index
    %c0_8 = arith.constant 0 : index
    %7 = vector.load %arg2[%c0_7, %c0_8] : memref<16x37xbf16, #tpu.memory_space<vmem>>, vector<16x37xbf16>
    %c0_9 = arith.constant 0 : index
    %c0_10 = arith.constant 0 : index
    %c0_11 = arith.constant 0 : index
    %8 = vector.load %arg0[%c0_9, %c0_10, %c0_11] : memref<2x37x64xbf16, #tpu.memory_space<vmem>>, vector<1x37x64xbf16>
    %9 = vector.shape_cast %8 : vector<1x37x64xbf16> to vector<37x64xbf16>
    %cst = arith.constant dense<0.000000e+00> : vector<16x64xf32>
    %10 = tpu.matmul %7, %9, %cst {dimension_numbers = #tpu.dot_dimension_numbers<[1], [0], [0], [1], [0, 0, 1, 1], [], []>} : vector<16x37xbf16>, vector<37x64xbf16>, vector<16x64xf32> -> vector<16x64xf32>
    %cst_12 = arith.constant 0.000000e+00 : f32
    %11 = vector.broadcast %cst_12 : f32 to vector<16x64xf32>
    %12 = arith.maximumf %10, %11 : vector<16x64xf32>
    %c1_13 = arith.constant 1 : index
    %c0_14 = arith.constant 0 : index
    %c0_15 = arith.constant 0 : index
    %13 = vector.load %arg0[%c1_13, %c0_14, %c0_15] : memref<2x37x64xbf16, #tpu.memory_space<vmem>>, vector<1x37x64xbf16>
    %14 = vector.shape_cast %13 : vector<1x37x64xbf16> to vector<37x64xbf16>
    %cst_16 = arith.constant dense<0.000000e+00> : vector<16x64xf32>
    %15 = tpu.matmul %7, %14, %cst_16 {dimension_numbers = #tpu.dot_dimension_numbers<[1], [0], [0], [1], [0, 0, 1, 1], [], []>} : vector<16x37xbf16>, vector<37x64xbf16>, vector<16x64xf32> -> vector<16x64xf32>
    %cst_17 = arith.constant 0.000000e+00 : f32
    %16 = vector.broadcast %cst_17 : f32 to vector<16x64xf32>
    %17 = arith.maximumf %15, %16 : vector<16x64xf32>
    %18 = vector.extract_strided_slice %12 {offsets = [0, 0], sizes = [1, 64], strides = [1, 1]} : vector<16x64xf32> to vector<1x64xf32>
    %19 = vector.extract_strided_slice %17 {offsets = [0, 0], sizes = [1, 64], strides = [1, 1]} : vector<16x64xf32> to vector<1x64xf32>
    %20 = tpu.concatenate %18, %19 in 0 : vector<1x64xf32>, vector<1x64xf32> -> vector<2x64xf32>
    %21 = arith.truncf %20 : vector<2x64xf32> to vector<2x64xbf16>
    %c0_18 = arith.constant 0 : index
    %c0_19 = arith.constant 0 : index
    %c0_20 = arith.constant 0 : index
    %22 = vector.load %arg3[%c0_18, %c0_19, %c0_20] : memref<16x64x256xbf16, #tpu.memory_space<vmem>>, vector<1x64x256xbf16>
    %23 = vector.shape_cast %22 : vector<1x64x256xbf16> to vector<64x256xbf16>
    %cst_21 = arith.constant dense<0.000000e+00> : vector<2x256xf32>
    %24 = tpu.matmul %21, %23, %cst_21 {dimension_numbers = #tpu.dot_dimension_numbers<[1], [0], [0], [1], [0, 0, 1, 1], [], []>} : vector<2x64xbf16>, vector<64x256xbf16>, vector<2x256xf32> -> vector<2x256xf32>
    %25 = vector.extract_strided_slice %12 {offsets = [1, 0], sizes = [1, 64], strides = [1, 1]} : vector<16x64xf32> to vector<1x64xf32>
    %26 = vector.extract_strided_slice %17 {offsets = [1, 0], sizes = [1, 64], strides = [1, 1]} : vector<16x64xf32> to vector<1x64xf32>
    %27 = tpu.concatenate %25, %26 in 0 : vector<1x64xf32>, vector<1x64xf32> -> vector<2x64xf32>
    %28 = arith.truncf %27 : vector<2x64xf32> to vector<2x64xbf16>
    %c1_22 = arith.constant 1 : index
    %c0_23 = arith.constant 0 : index
    %c0_24 = arith.constant 0 : index
    %29 = vector.load %arg3[%c1_22, %c0_23, %c0_24] : memref<16x64x256xbf16, #tpu.memory_space<vmem>>, vector<1x64x256xbf16>
    %30 = vector.shape_cast %29 : vector<1x64x256xbf16> to vector<64x256xbf16>
    %cst_25 = arith.constant dense<0.000000e+00> : vector<2x256xf32>
    %31 = tpu.matmul %28, %30, %cst_25 {dimension_numbers = #tpu.dot_dimension_numbers<[1], [0], [0], [1], [0, 0, 1, 1], [], []>} : vector<2x64xbf16>, vector<64x256xbf16>, vector<2x256xf32> -> vector<2x256xf32>
    %32 = vector.extract_strided_slice %12 {offsets = [2, 0], sizes = [1, 64], strides = [1, 1]} : vector<16x64xf32> to vector<1x64xf32>
    %33 = vector.extract_strided_slice %17 {offsets = [2, 0], sizes = [1, 64], strides = [1, 1]} : vector<16x64xf32> to vector<1x64xf32>
    %34 = tpu.concatenate %32, %33 in 0 : vector<1x64xf32>, vector<1x64xf32> -> vector<2x64xf32>
    %35 = arith.truncf %34 : vector<2x64xf32> to vector<2x64xbf16>
    %c2_26 = arith.constant 2 : index
    %c0_27 = arith.constant 0 : index
    %c0_28 = arith.constant 0 : index
    %36 = vector.load %arg3[%c2_26, %c0_27, %c0_28] : memref<16x64x256xbf16, #tpu.memory_space<vmem>>, vector<1x64x256xbf16>
    %37 = vector.shape_cast %36 : vector<1x64x256xbf16> to vector<64x256xbf16>
    %cst_29 = arith.constant dense<0.000000e+00> : vector<2x256xf32>
    %38 = tpu.matmul %35, %37, %cst_29 {dimension_numbers = #tpu.dot_dimension_numbers<[1], [0], [0], [1], [0, 0, 1, 1], [], []>} : vector<2x64xbf16>, vector<64x256xbf16>, vector<2x256xf32> -> vector<2x256xf32>
    %39 = vector.extract_strided_slice %12 {offsets = [3, 0], sizes = [1, 64], strides = [1, 1]} : vector<16x64xf32> to vector<1x64xf32>
    %40 = vector.extract_strided_slice %17 {offsets = [3, 0], sizes = [1, 64], strides = [1, 1]} : vector<16x64xf32> to vector<1x64xf32>
    %41 = tpu.concatenate %39, %40 in 0 : vector<1x64xf32>, vector<1x64xf32> -> vector<2x64xf32>
    %42 = arith.truncf %41 : vector<2x64xf32> to vector<2x64xbf16>
    %c3_30 = arith.constant 3 : index
    %c0_31 = arith.constant 0 : index
    %c0_32 = arith.constant 0 : index
    %43 = vector.load %arg3[%c3_30, %c0_31, %c0_32] : memref<16x64x256xbf16, #tpu.memory_space<vmem>>, vector<1x64x256xbf16>
    %44 = vector.shape_cast %43 : vector<1x64x256xbf16> to vector<64x256xbf16>
    %cst_33 = arith.constant dense<0.000000e+00> : vector<2x256xf32>
    %45 = tpu.matmul %42, %44, %cst_33 {dimension_numbers = #tpu.dot_dimension_numbers<[1], [0], [0], [1], [0, 0, 1, 1], [], []>} : vector<2x64xbf16>, vector<64x256xbf16>, vector<2x256xf32> -> vector<2x256xf32>
    %46 = vector.extract_strided_slice %12 {offsets = [4, 0], sizes = [1, 64], strides = [1, 1]} : vector<16x64xf32> to vector<1x64xf32>
    %47 = vector.extract_strided_slice %17 {offsets = [4, 0], sizes = [1, 64], strides = [1, 1]} : vector<16x64xf32> to vector<1x64xf32>
    %48 = tpu.concatenate %46, %47 in 0 : vector<1x64xf32>, vector<1x64xf32> -> vector<2x64xf32>
    %49 = arith.truncf %48 : vector<2x64xf32> to vector<2x64xbf16>
    %c4_34 = arith.constant 4 : index
    %c0_35 = arith.constant 0 : index
    %c0_36 = arith.constant 0 : index
    %50 = vector.load %arg3[%c4_34, %c0_35, %c0_36] : memref<16x64x256xbf16, #tpu.memory_space<vmem>>, vector<1x64x256xbf16>
    %51 = vector.shape_cast %50 : vector<1x64x256xbf16> to vector<64x256xbf16>
    %cst_37 = arith.constant dense<0.000000e+00> : vector<2x256xf32>
    %52 = tpu.matmul %49, %51, %cst_37 {dimension_numbers = #tpu.dot_dimension_numbers<[1], [0], [0], [1], [0, 0, 1, 1], [], []>} : vector<2x64xbf16>, vector<64x256xbf16>, vector<2x256xf32> -> vector<2x256xf32>
    %53 = arith.addf %24, %52 : vector<2x256xf32>
    %54 = vector.extract_strided_slice %12 {offsets = [5, 0], sizes = [1, 64], strides = [1, 1]} : vector<16x64xf32> to vector<1x64xf32>
    %55 = vector.extract_strided_slice %17 {offsets = [5, 0], sizes = [1, 64], strides = [1, 1]} : vector<16x64xf32> to vector<1x64xf32>
    %56 = tpu.concatenate %54, %55 in 0 : vector<1x64xf32>, vector<1x64xf32> -> vector<2x64xf32>
    %57 = arith.truncf %56 : vector<2x64xf32> to vector<2x64xbf16>
    %c5_38 = arith.constant 5 : index
    %c0_39 = arith.constant 0 : index
    %c0_40 = arith.constant 0 : index
    %58 = vector.load %arg3[%c5_38, %c0_39, %c0_40] : memref<16x64x256xbf16, #tpu.memory_space<vmem>>, vector<1x64x256xbf16>
    %59 = vector.shape_cast %58 : vector<1x64x256xbf16> to vector<64x256xbf16>
    %cst_41 = arith.constant dense<0.000000e+00> : vector<2x256xf32>
    %60 = tpu.matmul %57, %59, %cst_41 {dimension_numbers = #tpu.dot_dimension_numbers<[1], [0], [0], [1], [0, 0, 1, 1], [], []>} : vector<2x64xbf16>, vector<64x256xbf16>, vector<2x256xf32> -> vector<2x256xf32>
    %61 = arith.addf %31, %60 : vector<2x256xf32>
    %62 = vector.extract_strided_slice %12 {offsets = [6, 0], sizes = [1, 64], strides = [1, 1]} : vector<16x64xf32> to vector<1x64xf32>
    %63 = vector.extract_strided_slice %17 {offsets = [6, 0], sizes = [1, 64], strides = [1, 1]} : vector<16x64xf32> to vector<1x64xf32>
    %64 = tpu.concatenate %62, %63 in 0 : vector<1x64xf32>, vector<1x64xf32> -> vector<2x64xf32>
    %65 = arith.truncf %64 : vector<2x64xf32> to vector<2x64xbf16>
    %c6 = arith.constant 6 : index
    %c0_42 = arith.constant 0 : index
    %c0_43 = arith.constant 0 : index
    %66 = vector.load %arg3[%c6, %c0_42, %c0_43] : memref<16x64x256xbf16, #tpu.memory_space<vmem>>, vector<1x64x256xbf16>
    %67 = vector.shape_cast %66 : vector<1x64x256xbf16> to vector<64x256xbf16>
    %cst_44 = arith.constant dense<0.000000e+00> : vector<2x256xf32>
    %68 = tpu.matmul %65, %67, %cst_44 {dimension_numbers = #tpu.dot_dimension_numbers<[1], [0], [0], [1], [0, 0, 1, 1], [], []>} : vector<2x64xbf16>, vector<64x256xbf16>, vector<2x256xf32> -> vector<2x256xf32>
    %69 = arith.addf %38, %68 : vector<2x256xf32>
    %70 = vector.extract_strided_slice %12 {offsets = [7, 0], sizes = [1, 64], strides = [1, 1]} : vector<16x64xf32> to vector<1x64xf32>
    %71 = vector.extract_strided_slice %17 {offsets = [7, 0], sizes = [1, 64], strides = [1, 1]} : vector<16x64xf32> to vector<1x64xf32>
    %72 = tpu.concatenate %70, %71 in 0 : vector<1x64xf32>, vector<1x64xf32> -> vector<2x64xf32>
    %73 = arith.truncf %72 : vector<2x64xf32> to vector<2x64xbf16>
    %c7 = arith.constant 7 : index
    %c0_45 = arith.constant 0 : index
    %c0_46 = arith.constant 0 : index
    %74 = vector.load %arg3[%c7, %c0_45, %c0_46] : memref<16x64x256xbf16, #tpu.memory_space<vmem>>, vector<1x64x256xbf16>
    %75 = vector.shape_cast %74 : vector<1x64x256xbf16> to vector<64x256xbf16>
    %cst_47 = arith.constant dense<0.000000e+00> : vector<2x256xf32>
    %76 = tpu.matmul %73, %75, %cst_47 {dimension_numbers = #tpu.dot_dimension_numbers<[1], [0], [0], [1], [0, 0, 1, 1], [], []>} : vector<2x64xbf16>, vector<64x256xbf16>, vector<2x256xf32> -> vector<2x256xf32>
    %77 = arith.addf %45, %76 : vector<2x256xf32>
    %78 = vector.extract_strided_slice %12 {offsets = [8, 0], sizes = [1, 64], strides = [1, 1]} : vector<16x64xf32> to vector<1x64xf32>
    %79 = vector.extract_strided_slice %17 {offsets = [8, 0], sizes = [1, 64], strides = [1, 1]} : vector<16x64xf32> to vector<1x64xf32>
    %80 = tpu.concatenate %78, %79 in 0 : vector<1x64xf32>, vector<1x64xf32> -> vector<2x64xf32>
    %81 = arith.truncf %80 : vector<2x64xf32> to vector<2x64xbf16>
    %c8_48 = arith.constant 8 : index
    %c0_49 = arith.constant 0 : index
    %c0_50 = arith.constant 0 : index
    %82 = vector.load %arg3[%c8_48, %c0_49, %c0_50] : memref<16x64x256xbf16, #tpu.memory_space<vmem>>, vector<1x64x256xbf16>
    %83 = vector.shape_cast %82 : vector<1x64x256xbf16> to vector<64x256xbf16>
    %cst_51 = arith.constant dense<0.000000e+00> : vector<2x256xf32>
    %84 = tpu.matmul %81, %83, %cst_51 {dimension_numbers = #tpu.dot_dimension_numbers<[1], [0], [0], [1], [0, 0, 1, 1], [], []>} : vector<2x64xbf16>, vector<64x256xbf16>, vector<2x256xf32> -> vector<2x256xf32>
    %85 = arith.addf %53, %84 : vector<2x256xf32>
    %86 = vector.extract_strided_slice %12 {offsets = [9, 0], sizes = [1, 64], strides = [1, 1]} : vector<16x64xf32> to vector<1x64xf32>
    %87 = vector.extract_strided_slice %17 {offsets = [9, 0], sizes = [1, 64], strides = [1, 1]} : vector<16x64xf32> to vector<1x64xf32>
    %88 = tpu.concatenate %86, %87 in 0 : vector<1x64xf32>, vector<1x64xf32> -> vector<2x64xf32>
    %89 = arith.truncf %88 : vector<2x64xf32> to vector<2x64xbf16>
    %c9 = arith.constant 9 : index
    %c0_52 = arith.constant 0 : index
    %c0_53 = arith.constant 0 : index
    %90 = vector.load %arg3[%c9, %c0_52, %c0_53] : memref<16x64x256xbf16, #tpu.memory_space<vmem>>, vector<1x64x256xbf16>
    %91 = vector.shape_cast %90 : vector<1x64x256xbf16> to vector<64x256xbf16>
    %cst_54 = arith.constant dense<0.000000e+00> : vector<2x256xf32>
    %92 = tpu.matmul %89, %91, %cst_54 {dimension_numbers = #tpu.dot_dimension_numbers<[1], [0], [0], [1], [0, 0, 1, 1], [], []>} : vector<2x64xbf16>, vector<64x256xbf16>, vector<2x256xf32> -> vector<2x256xf32>
    %93 = arith.addf %61, %92 : vector<2x256xf32>
    %94 = vector.extract_strided_slice %12 {offsets = [10, 0], sizes = [1, 64], strides = [1, 1]} : vector<16x64xf32> to vector<1x64xf32>
    %95 = vector.extract_strided_slice %17 {offsets = [10, 0], sizes = [1, 64], strides = [1, 1]} : vector<16x64xf32> to vector<1x64xf32>
    %96 = tpu.concatenate %94, %95 in 0 : vector<1x64xf32>, vector<1x64xf32> -> vector<2x64xf32>
    %97 = arith.truncf %96 : vector<2x64xf32> to vector<2x64xbf16>
    %c10 = arith.constant 10 : index
    %c0_55 = arith.constant 0 : index
    %c0_56 = arith.constant 0 : index
    %98 = vector.load %arg3[%c10, %c0_55, %c0_56] : memref<16x64x256xbf16, #tpu.memory_space<vmem>>, vector<1x64x256xbf16>
    %99 = vector.shape_cast %98 : vector<1x64x256xbf16> to vector<64x256xbf16>
    %cst_57 = arith.constant dense<0.000000e+00> : vector<2x256xf32>
    %100 = tpu.matmul %97, %99, %cst_57 {dimension_numbers = #tpu.dot_dimension_numbers<[1], [0], [0], [1], [0, 0, 1, 1], [], []>} : vector<2x64xbf16>, vector<64x256xbf16>, vector<2x256xf32> -> vector<2x256xf32>
    %101 = arith.addf %69, %100 : vector<2x256xf32>
    %102 = vector.extract_strided_slice %12 {offsets = [11, 0], sizes = [1, 64], strides = [1, 1]} : vector<16x64xf32> to vector<1x64xf32>
    %103 = vector.extract_strided_slice %17 {offsets = [11, 0], sizes = [1, 64], strides = [1, 1]} : vector<16x64xf32> to vector<1x64xf32>
    %104 = tpu.concatenate %102, %103 in 0 : vector<1x64xf32>, vector<1x64xf32> -> vector<2x64xf32>
    %105 = arith.truncf %104 : vector<2x64xf32> to vector<2x64xbf16>
    %c11 = arith.constant 11 : index
    %c0_58 = arith.constant 0 : index
    %c0_59 = arith.constant 0 : index
    %106 = vector.load %arg3[%c11, %c0_58, %c0_59] : memref<16x64x256xbf16, #tpu.memory_space<vmem>>, vector<1x64x256xbf16>
    %107 = vector.shape_cast %106 : vector<1x64x256xbf16> to vector<64x256xbf16>
    %cst_60 = arith.constant dense<0.000000e+00> : vector<2x256xf32>
    %108 = tpu.matmul %105, %107, %cst_60 {dimension_numbers = #tpu.dot_dimension_numbers<[1], [0], [0], [1], [0, 0, 1, 1], [], []>} : vector<2x64xbf16>, vector<64x256xbf16>, vector<2x256xf32> -> vector<2x256xf32>
    %109 = arith.addf %77, %108 : vector<2x256xf32>
    %110 = vector.extract_strided_slice %12 {offsets = [12, 0], sizes = [1, 64], strides = [1, 1]} : vector<16x64xf32> to vector<1x64xf32>
    %111 = vector.extract_strided_slice %17 {offsets = [12, 0], sizes = [1, 64], strides = [1, 1]} : vector<16x64xf32> to vector<1x64xf32>
    %112 = tpu.concatenate %110, %111 in 0 : vector<1x64xf32>, vector<1x64xf32> -> vector<2x64xf32>
    %113 = arith.truncf %112 : vector<2x64xf32> to vector<2x64xbf16>
    %c12 = arith.constant 12 : index
    %c0_61 = arith.constant 0 : index
    %c0_62 = arith.constant 0 : index
    %114 = vector.load %arg3[%c12, %c0_61, %c0_62] : memref<16x64x256xbf16, #tpu.memory_space<vmem>>, vector<1x64x256xbf16>
    %115 = vector.shape_cast %114 : vector<1x64x256xbf16> to vector<64x256xbf16>
    %cst_63 = arith.constant dense<0.000000e+00> : vector<2x256xf32>
    %116 = tpu.matmul %113, %115, %cst_63 {dimension_numbers = #tpu.dot_dimension_numbers<[1], [0], [0], [1], [0, 0, 1, 1], [], []>} : vector<2x64xbf16>, vector<64x256xbf16>, vector<2x256xf32> -> vector<2x256xf32>
    %117 = arith.addf %85, %116 : vector<2x256xf32>
    %118 = vector.extract_strided_slice %12 {offsets = [13, 0], sizes = [1, 64], strides = [1, 1]} : vector<16x64xf32> to vector<1x64xf32>
    %119 = vector.extract_strided_slice %17 {offsets = [13, 0], sizes = [1, 64], strides = [1, 1]} : vector<16x64xf32> to vector<1x64xf32>
    %120 = tpu.concatenate %118, %119 in 0 : vector<1x64xf32>, vector<1x64xf32> -> vector<2x64xf32>
    %121 = arith.truncf %120 : vector<2x64xf32> to vector<2x64xbf16>
    %c13 = arith.constant 13 : index
    %c0_64 = arith.constant 0 : index
    %c0_65 = arith.constant 0 : index
    %122 = vector.load %arg3[%c13, %c0_64, %c0_65] : memref<16x64x256xbf16, #tpu.memory_space<vmem>>, vector<1x64x256xbf16>
    %123 = vector.shape_cast %122 : vector<1x64x256xbf16> to vector<64x256xbf16>
    %cst_66 = arith.constant dense<0.000000e+00> : vector<2x256xf32>
    %124 = tpu.matmul %121, %123, %cst_66 {dimension_numbers = #tpu.dot_dimension_numbers<[1], [0], [0], [1], [0, 0, 1, 1], [], []>} : vector<2x64xbf16>, vector<64x256xbf16>, vector<2x256xf32> -> vector<2x256xf32>
    %125 = arith.addf %93, %124 : vector<2x256xf32>
    %126 = vector.extract_strided_slice %12 {offsets = [14, 0], sizes = [1, 64], strides = [1, 1]} : vector<16x64xf32> to vector<1x64xf32>
    %127 = vector.extract_strided_slice %17 {offsets = [14, 0], sizes = [1, 64], strides = [1, 1]} : vector<16x64xf32> to vector<1x64xf32>
    %128 = tpu.concatenate %126, %127 in 0 : vector<1x64xf32>, vector<1x64xf32> -> vector<2x64xf32>
    %129 = arith.truncf %128 : vector<2x64xf32> to vector<2x64xbf16>
    %c14 = arith.constant 14 : index
    %c0_67 = arith.constant 0 : index
    %c0_68 = arith.constant 0 : index
    %130 = vector.load %arg3[%c14, %c0_67, %c0_68] : memref<16x64x256xbf16, #tpu.memory_space<vmem>>, vector<1x64x256xbf16>
    %131 = vector.shape_cast %130 : vector<1x64x256xbf16> to vector<64x256xbf16>
    %cst_69 = arith.constant dense<0.000000e+00> : vector<2x256xf32>
    %132 = tpu.matmul %129, %131, %cst_69 {dimension_numbers = #tpu.dot_dimension_numbers<[1], [0], [0], [1], [0, 0, 1, 1], [], []>} : vector<2x64xbf16>, vector<64x256xbf16>, vector<2x256xf32> -> vector<2x256xf32>
    %133 = arith.addf %101, %132 : vector<2x256xf32>
    %134 = vector.extract_strided_slice %12 {offsets = [15, 0], sizes = [1, 64], strides = [1, 1]} : vector<16x64xf32> to vector<1x64xf32>
    %135 = vector.extract_strided_slice %17 {offsets = [15, 0], sizes = [1, 64], strides = [1, 1]} : vector<16x64xf32> to vector<1x64xf32>
    %136 = tpu.concatenate %134, %135 in 0 : vector<1x64xf32>, vector<1x64xf32> -> vector<2x64xf32>
    %137 = arith.truncf %136 : vector<2x64xf32> to vector<2x64xbf16>
    %c15 = arith.constant 15 : index
    %c0_70 = arith.constant 0 : index
    %c0_71 = arith.constant 0 : index
    %138 = vector.load %arg3[%c15, %c0_70, %c0_71] : memref<16x64x256xbf16, #tpu.memory_space<vmem>>, vector<1x64x256xbf16>
    %139 = vector.shape_cast %138 : vector<1x64x256xbf16> to vector<64x256xbf16>
    %cst_72 = arith.constant dense<0.000000e+00> : vector<2x256xf32>
    %140 = tpu.matmul %137, %139, %cst_72 {dimension_numbers = #tpu.dot_dimension_numbers<[1], [0], [0], [1], [0, 0, 1, 1], [], []>} : vector<2x64xbf16>, vector<64x256xbf16>, vector<2x256xf32> -> vector<2x256xf32>
    %141 = arith.addf %109, %140 : vector<2x256xf32>
    %142 = arith.addf %117, %125 : vector<2x256xf32>
    %143 = arith.addf %133, %141 : vector<2x256xf32>
    %144 = arith.addf %142, %143 : vector<2x256xf32>
    %145 = vector.broadcast %0 : vector<1x256xf32> to vector<2x256xf32>
    %146 = arith.addf %144, %145 : vector<2x256xf32>
    %c0_73 = arith.constant 0 : index
    %c0_74 = arith.constant 0 : index
    %147 = vector.load %arg1[%c0_73, %c0_74] : memref<2x6xf32, #tpu.memory_space<vmem>>, vector<2x6xf32>
    %cst_75 = arith.constant dense<0.000000e+00> : vector<2x256xf32>
    %148 = tpu.matmul %147, %6, %cst_75 {dimension_numbers = #tpu.dot_dimension_numbers<[1], [0], [0], [1], [0, 0, 1, 1], [], []>} : vector<2x6xf32>, vector<6x256xf32>, vector<2x256xf32> -> vector<2x256xf32>
    %149 = vector.broadcast %1 : vector<1x256xf32> to vector<2x256xf32>
    %150 = arith.addf %148, %149 : vector<2x256xf32>
    %151 = arith.mulf %146, %150 : vector<2x256xf32>
    %152 = arith.truncf %151 : vector<2x256xf32> to vector<2x256xbf16>
    %c0_76 = arith.constant 0 : index
    %c0_77 = arith.constant 0 : index
    %153 = vector.load %arg4[%c0_76, %c0_77] : memref<256x128xbf16, #tpu.memory_space<vmem>>, vector<256x128xbf16>
    %cst_78 = arith.constant dense<0.000000e+00> : vector<2x128xf32>
    %154 = tpu.matmul %152, %153, %cst_78 {dimension_numbers = #tpu.dot_dimension_numbers<[1], [0], [0], [1], [0, 0, 1, 1], [], []>} : vector<2x256xbf16>, vector<256x128xbf16>, vector<2x128xf32> -> vector<2x128xf32>
    %155 = vector.broadcast %2 : vector<1x128xf32> to vector<2x128xf32>
    %156 = arith.addf %154, %155 : vector<2x128xf32>
    %157 = arith.truncf %156 : vector<2x128xf32> to vector<2x128xbf16>
    %c0_79 = arith.constant 0 : index
    %c0_80 = arith.constant 0 : index
    %158 = vector.load %arg5[%c0_79, %c0_80] : memref<128x64xbf16, #tpu.memory_space<vmem>>, vector<128x64xbf16>
    %cst_81 = arith.constant dense<0.000000e+00> : vector<2x64xf32>
    %159 = tpu.matmul %157, %158, %cst_81 {dimension_numbers = #tpu.dot_dimension_numbers<[1], [0], [0], [1], [0, 0, 1, 1], [], []>} : vector<2x128xbf16>, vector<128x64xbf16>, vector<2x64xf32> -> vector<2x64xf32>
    %160 = vector.broadcast %3 : vector<1x64xf32> to vector<2x64xf32>
    %161 = arith.addf %159, %160 : vector<2x64xf32>
    %cst_82 = arith.constant 0.000000e+00 : f32
    %162 = vector.broadcast %cst_82 : f32 to vector<2x64xf32>
    %163 = arith.maximumf %161, %162 : vector<2x64xf32>
    %164 = vector.broadcast %4 : vector<1x64xf32> to vector<2x64xf32>
    %165 = arith.mulf %163, %164 : vector<2x64xf32>
    %cst_83 = arith.constant dense<0.000000e+00> : vector<2xf32>
    %166 = vector.multi_reduction <add>, %165, %cst_83 [1] : vector<2x64xf32> to vector<2xf32>
    %167 = vector.shape_cast %166 : vector<2xf32> to vector<2x1xf32>
    %168 = vector.broadcast %5 : vector<1x1xf32> to vector<2x1xf32>
    %169 = arith.addf %167, %168 : vector<2x1xf32>
    %c0_84 = arith.constant 0 : index
    %c0_85 = arith.constant 0 : index
    %170 = vector.load %arg7[%c0_84, %c0_85] : memref<2x1xf32, #tpu.memory_space<vmem>>, vector<2x1xf32>
    tpu.vector_store %arg7[%c0_84, %c0_85], %169 {strides = array<i32>} : memref<2x1xf32, #tpu.memory_space<vmem>>, vector<2x1xf32>,
    return
  }
}

</mosaic_0001>

<llo_original>
// kernel: small_disc_net_forward.1
$region0: #{small_disc_net_forward.1}
  #allocation0 [shape = 'u32[]', space=smem, size = 0x4, offset = 0x4, fixed_abs, tag = 'smem constant byte address 0x4 - core index']
  #allocation1 [shape = 'u32[144,128]{1,0:T(1,128)}', space=vmem, size = 0x12000, scoped, tag = 'internal scratch']
  %s0 = inlined_call_operand.vmem [shape: bf16[2,37,64], index: 0, kind: input, shape index: {}]
  %s1 = inlined_call_operand.vmem [shape: f32[2,6], index: 1, kind: input, shape index: {}]
  %s2 = inlined_call_operand.vmem [shape: bf16[16,37], index: 2, kind: input, shape index: {}]
  %s3 = inlined_call_operand.vmem [shape: bf16[16,64,256], index: 3, kind: input, shape index: {}]
  %s4 = inlined_call_operand.vmem [shape: bf16[256,128], index: 4, kind: input, shape index: {}]
  %s5 = inlined_call_operand.vmem [shape: bf16[128,64], index: 5, kind: input, shape index: {}]
  %s6 = inlined_call_operand.vmem [shape: f32[16,256], index: 6, kind: input, shape index: {}]
  %s7 = inlined_call_operand.vmem [shape: f32[2,1], index: 7, kind: output, shape index: {}]
  %s8 = sld [smem:[#allocation0]]
  $region38: #{small_disc_net_forward.1} parent=0
    _
  %s10 = ssub.s32 1, %s8
  %s11 = scalar_select 0, %s10, %s8
  // Predicated region
  $region2: #{small_disc_net_forward.1} parent=0 // pred_check
    _
  $region3: #{small_disc_net_forward.1} parent=0 // pred_check_branch
    %13 = sbr.rel (0) target = $region5
  $region4: #{small_disc_net_forward.1} parent=0 // pred_region
    _
  $region5: #{small_disc_net_forward.1} parent=0 // pred_fallthru
    _
  // Predicated region
  $region6: #{small_disc_net_forward.1} parent=0 // pred_check
    _
  $region7: #{small_disc_net_forward.1} parent=0 // pred_check_branch
    %15 = sbr.rel (0) target = $region9
  $region8: #{small_disc_net_forward.1} parent=0 // pred_region
    _
  $region9: #{small_disc_net_forward.1} parent=0 // pred_fallthru
    _
  // Predicated region
  $region10: #{small_disc_net_forward.1} parent=0 // pred_check
    _
  $region11: #{small_disc_net_forward.1} parent=0 // pred_check_branch
    %17 = sbr.rel (0) target = $region13
  $region12: #{small_disc_net_forward.1} parent=0 // pred_region
    _
  $region13: #{small_disc_net_forward.1} parent=0 // pred_fallthru
    _
  // Predicated region
  $region14: #{small_disc_net_forward.1} parent=0 // pred_check
    _
  $region15: #{small_disc_net_forward.1} parent=0 // pred_check_branch
    %19 = sbr.rel (0) target = $region17
  $region16: #{small_disc_net_forward.1} parent=0 // pred_region
    _
  $region17: #{small_disc_net_forward.1} parent=0 // pred_fallthru
    _
  // Predicated region
  $region18: #{small_disc_net_forward.1} parent=0 // pred_check
    _
  $region19: #{small_disc_net_forward.1} parent=0 // pred_check_branch
    %21 = sbr.rel (0) target = $region21
  $region20: #{small_disc_net_forward.1} parent=0 // pred_region
    _
  $region21: #{small_disc_net_forward.1} parent=0 // pred_fallthru
    _
  // Predicated region
  $region22: #{small_disc_net_forward.1} parent=0 // pred_check
    _
  $region23: #{small_disc_net_forward.1} parent=0 // pred_check_branch
    %23 = sbr.rel (0) target = $region25
  $region24: #{small_disc_net_forward.1} parent=0 // pred_region
    _
  $region25: #{small_disc_net_forward.1} parent=0 // pred_fallthru
    _
  // Predicated region
  $region26: #{small_disc_net_forward.1} parent=0 // pred_check
    _
  $region27: #{small_disc_net_forward.1} parent=0 // pred_check_branch
    %25 = sbr.rel (0) target = $region29
  $region28: #{small_disc_net_forward.1} parent=0 // pred_region
    _
  $region29: #{small_disc_net_forward.1} parent=0 // pred_fallthru
    _
  %v27 = vld [vmem:[%s6] ss:$8 sm:$0x3]
  %s28 = scalar_lea.vmem %s6, 1
  %v29 = vld [vmem:[%s28] ss:$8 sm:$0x3]
  %v30 = vld [vmem:[%s6 + $0x2] ss:$0 sm:$0xff]
  %v31 = vld [vmem:[%s6 + $0x3] ss:$0 sm:$0xff]
  %v32 = vld [vmem:[%s6 + $0x4] ss:$0 sm:$0xff]
  %v33 = vld [vmem:[%s6 + $0x5] ss:$0 sm:$0xff]
  %v34 = vld [vmem:[%s6 + $0x10] sm:$0x3f]
  %v35 = vld [vmem:[%s6 + $0x18] sm:$0x3f]
  %v36 = vld [vmem:[%s2] sm:$0xf]
  %v37 = vld [vmem:[%s2 + $0x4] sm:$0xf]
  %v38 = vld [vmem:[%s0] sm:$0xf]
  %v39 = vld [vmem:[%s0 + $0x4] sm:$0xf]
  %v40 = vld [vmem:[%s0 + $0x8] sm:$0xf]
  %v41 = vld [vmem:[%s0 + $0xc] sm:$0xf]
  %v42 = vld [vmem:[%s0 + $0x10] sm:$0x7]
  %v45 = vunpack.c.l.b16 %v36
  %v46 = vunpack.c.l.b16 %v37
  %v47 = vpack.c.b16 %v46, %v45
  %v53 = vunpack.c.l.b16 %v38
  %v54 = vunpack.c.l.b16 %v39
  %v55 = vunpack.c.l.b16 %v40
  %v56 = vunpack.c.l.b16 %v41
  %v57 = vunpack.c.l.b16 %v42
  %v58 = vpack.c.b16 %v54, %v53
  %v59 = vpack.c.b16 %v56, %v55
  %v60 = vpack.c.b16 %v57, %v57
  %vm63 = vcmask 302080
  %v65 = vsel %vm63, %v47, 0
  %vm67 = vcmask 1041408
  %vm68 = vcmask 1042432
  %v69 = vsel %vm67, 4294967295, 65535
  %v70 = vsel %vm68, %v69, 0
  %v72 = vand.u32 %v60, %v70
  %74 = vmatprep.subr.bf16.mxu0 0
  %75 = vmatpush1.bf16.msra.mxu0 %v58
  %76 = vmatprep.subr.bf16.mxu0 0
  %77 = vmatpush1.bf16.msra.mxu0 %v59
  %78 = vmatprep.subr.bf16.mxu0 0
  %79 = vmatpush1.bf16.msra.mxu0 %v72
  %80 = vmatprep.subr.bf16.mxu0 0
  %81 = vmatpush1.bf16.msra.mxu0 0
  %82 = vmatprep.subr.bf16.mxu0 0
  %83 = vmatpush1.bf16.msra.mxu0 0
  %84 = vmatprep.subr.bf16.mxu0 0
  %85 = vmatpush1.bf16.msra.mxu0 0
  %86 = vmatprep.subr.bf16.mxu0 0
  %87 = vmatpush1.bf16.msra.mxu0 0
  %88 = vmatprep.subr.bf16.mxu0 0
  %89 = vmatpush1.bf16.msra.mxu0 0
  %90 = vmatprep.subr.bf16.mxu0 0
  %91 = vmatpush1.bf16.msra.mxu0 0
  %92 = vmatprep.subr.bf16.mxu0 0
  %93 = vmatpush1.bf16.msra.mxu0 0
  %94 = vmatprep.subr.bf16.mxu0 0
  %95 = vmatpush1.bf16.msra.mxu0 0
  %96 = vmatprep.subr.bf16.mxu0 0
  %97 = vmatpush1.bf16.msra.mxu0 0
  %98 = vmatprep.subr.bf16.mxu0 0
  %99 = vmatpush1.bf16.msra.mxu0 0
  %100 = vmatprep.subr.bf16.mxu0 0
  %101 = vmatpush1.bf16.msra.mxu0 0
  %102 = vmatprep.subr.bf16.mxu0 0
  %103 = vmatpush1.bf16.msra.mxu0 0
  %104 = vmatprep.subr.bf16.mxu0 0
  %105 = vmatpush1.bf16.msra.mxu0 0
  %106 = vmatprep.mubr.bf16.mxu0 0
  %107 = vmatmul.mubr.bf16.gmra.mrb[0].mxu0 %v65
  %v108 = vpop.f32.mrb[0].mxu0
  %v109 = vadd.f32 0.0, %v108
  %v110 = vpop.f32.mrb[0].mxu0
  %v111 = vpop.f32.mrb[0].mxu0
  %v112 = vadd.f32 0.0, %v111
  %v113 = vpop.f32.mrb[0].mxu0
  %114 = vdwg.mxu0
  %v115 = vmax.f32 %v109, 0.0
  %v116 = vmax.f32 %v112, 0.0
  %s117 = scalar_lea.vmem %s0, 20
  %v118 = vld [vmem:[%s117] sm:$0xf]
  %v119 = vld [vmem:[%s117 + $0x4] sm:$0xf]
  %v120 = vld [vmem:[%s117 + $0x8] sm:$0xf]
  %v121 = vld [vmem:[%s117 + $0xc] sm:$0xf]
  %v122 = vld [vmem:[%s117 + $0x10] sm:$0x7]
  %v128 = vunpack.c.l.b16 %v118
  %v129 = vunpack.c.l.b16 %v119
  %v130 = vunpack.c.l.b16 %v120
  %v131 = vunpack.c.l.b16 %v121
  %v132 = vunpack.c.l.b16 %v122
  %v133 = vpack.c.b16 %v129, %v128
  %v134 = vpack.c.b16 %v131, %v130
  %v135 = vpack.c.b16 %v132, %v132
  %v139 = vand.u32 %v135, %v70
  %141 = vmatprep.subr.bf16.mxu0 0
  %142 = vmatpush1.bf16.msra.mxu0 %v133
  %143 = vmatprep.subr.bf16.mxu0 0
  %144 = vmatpush1.bf16.msra.mxu0 %v134
  %145 = vmatprep.subr.bf16.mxu0 0
  %146 = vmatpush1.bf16.msra.mxu0 %v139
  %147 = vmatprep.subr.bf16.mxu0 0
  %148 = vmatpush1.bf16.msra.mxu0 0
  %149 = vmatprep.subr.bf16.mxu0 0
  %150 = vmatpush1.bf16.msra.mxu0 0
  %151 = vmatprep.subr.bf16.mxu0 0
  %152 = vmatpush1.bf16.msra.mxu0 0
  %153 = vmatprep.subr.bf16.mxu0 0
  %154 = vmatpush1.bf16.msra.mxu0 0
  %155 = vmatprep.subr.bf16.mxu0 0
  %156 = vmatpush1.bf16.msra.mxu0 0
  %157 = vmatprep.subr.bf16.mxu0 0
  %158 = vmatpush1.bf16.msra.mxu0 0
  %159 = vmatprep.subr.bf16.mxu0 0
  %160 = vmatpush1.bf16.msra.mxu0 0
  %161 = vmatprep.subr.bf16.mxu0 0
  %162 = vmatpush1.bf16.msra.mxu0 0
  %163 = vmatprep.subr.bf16.mxu0 0
  %164 = vmatpush1.bf16.msra.mxu0 0
  %165 = vmatprep.subr.bf16.mxu0 0
  %166 = vmatpush1.bf16.msra.mxu0 0
  %167 = vmatprep.subr.bf16.mxu0 0
  %168 = vmatpush1.bf16.msra.mxu0 0
  %169 = vmatprep.subr.bf16.mxu0 0
  %170 = vmatpush1.bf16.msra.mxu0 0
  %171 = vmatprep.subr.bf16.mxu0 0
  %172 = vmatpush1.bf16.msra.mxu0 0
  %173 = vmatprep.mubr.bf16.mxu0 0
  %174 = vmatmul.mubr.bf16.gmra.mrb[0].mxu0 %v65
  %v175 = vpop.f32.mrb[0].mxu0
  %v176 = vadd.f32 0.0, %v175
  %v177 = vpop.f32.mrb[0].mxu0
  %v178 = vpop.f32.mrb[0].mxu0
  %v179 = vadd.f32 0.0, %v178
  %v180 = vpop.f32.mrb[0].mxu0
  %181 = vdwg.mxu0
  %v182 = vmax.f32 %v176, 0.0
  %v183 = vmax.f32 %v179, 0.0
  %v185 = vrot.slane %v182, 7
  %vm187 = vcmask 1040384
  %v188 = vsel %vm187, %v115, %v185
  %v189 = vpack.c.bf16 %v188, %v188
  %v190 = vld [vmem:[%s3] sm:$0xff]
  %v191 = vld [vmem:[%s3 + $0x8] sm:$0xff]
  %v192 = vld [vmem:[%s3 + $0x10] sm:$0xff]
  %v193 = vld [vmem:[%s3 + $0x18] sm:$0xff]
  %v194 = vld [vmem:[%s3 + $0x20] sm:$0xff]
  %v195 = vld [vmem:[%s3 + $0x28] sm:$0xff]
  %v196 = vld [vmem:[%s3 + $0x30] sm:$0xff]
  %v197 = vld [vmem:[%s3 + $0x38] sm:$0xff]
  %v199 = vrot.slane %v115, 1
  %v201 = vsel %vm187, %v199, %v182
  %v202 = vpack.c.bf16 %v201, %v201
  %s203 = scalar_lea.vmem %s3, 64
  %v204 = vld [vmem:[%s203] sm:$0xff]
  %v205 = vld [vmem:[%s203 + $0x8] sm:$0xff]
  %v206 = vld [vmem:[%s203 + $0x10] sm:$0xff]
  %v207 = vld [vmem:[%s203 + $0x18] sm:$0xff]
  %v208 = vld [vmem:[%s203 + $0x20] sm:$0xff]
  %v209 = vld [vmem:[%s203 + $0x28] sm:$0xff]
  %v210 = vld [vmem:[%s203 + $0x30] sm:$0xff]
  %v211 = vld [vmem:[%s203 + $0x38] sm:$0xff]
  %v212 = vrot.slane %v115, 2
  %v214 = vrot.slane %v182, 1
  %v216 = vsel %vm187, %v212, %v214
  %v217 = vpack.c.bf16 %v216, %v216
  %s218 = scalar_lea.vmem %s3, 128
  %v219 = vld [vmem:[%s218] sm:$0xff]
  %v220 = vld [vmem:[%s218 + $0x8] sm:$0xff]
  %v221 = vld [vmem:[%s218 + $0x10] sm:$0xff]
  %v222 = vld [vmem:[%s218 + $0x18] sm:$0xff]
  %v223 = vld [vmem:[%s218 + $0x20] sm:$0xff]
  %v224 = vld [vmem:[%s218 + $0x28] sm:$0xff]
  %v225 = vld [vmem:[%s218 + $0x30] sm:$0xff]
  %v226 = vld [vmem:[%s218 + $0x38] sm:$0xff]
  %v227 = vrot.slane %v115, 3
  %v229 = vrot.slane %v182, 2
  %v231 = vsel %vm187, %v227, %v229
  %v232 = vpack.c.bf16 %v231, %v231
  %s233 = scalar_lea.vmem %s3, 192
  %v234 = vld [vmem:[%s233] sm:$0xff]
  %v235 = vld [vmem:[%s233 + $0x8] sm:$0xff]
  %v236 = vld [vmem:[%s233 + $0x10] sm:$0xff]
  %v237 = vld [vmem:[%s233 + $0x18] sm:$0xff]
  %v238 = vld [vmem:[%s233 + $0x20] sm:$0xff]
  %v239 = vld [vmem:[%s233 + $0x28] sm:$0xff]
  %v240 = vld [vmem:[%s233 + $0x30] sm:$0xff]
  %v241 = vld [vmem:[%s233 + $0x38] sm:$0xff]
  %v242 = vrot.slane %v115, 4
  %v244 = vrot.slane %v182, 3
  %v246 = vsel %vm187, %v242, %v244
  %v247 = vpack.c.bf16 %v246, %v246
  %s248 = scalar_lea.vmem %s3, 256
  %v249 = vld [vmem:[%s248] sm:$0xff]
  %v250 = vld [vmem:[%s248 + $0x8] sm:$0xff]
  %v251 = vld [vmem:[%s248 + $0x10] sm:$0xff]
  %v252 = vld [vmem:[%s248 + $0x18] sm:$0xff]
  %v253 = vld [vmem:[%s248 + $0x20] sm:$0xff]
  %v254 = vld [vmem:[%s248 + $0x28] sm:$0xff]
  %v255 = vld [vmem:[%s248 + $0x30] sm:$0xff]
  %v256 = vld [vmem:[%s248 + $0x38] sm:$0xff]
  %v265 = vunpack.c.l.b16 %v249
  %v266 = vunpack.c.h.b16 %v249
  %v267 = vunpack.c.l.b16 %v250
  %v268 = vunpack.c.h.b16 %v250
  %v269 = vunpack.c.l.b16 %v251
  %v270 = vunpack.c.h.b16 %v251
  %v271 = vunpack.c.l.b16 %v252
  %v272 = vunpack.c.h.b16 %v252
  %v273 = vunpack.c.l.b16 %v253
  %v274 = vunpack.c.h.b16 %v253
  %v275 = vunpack.c.l.b16 %v254
  %v276 = vunpack.c.h.b16 %v254
  %v277 = vunpack.c.l.b16 %v255
  %v278 = vunpack.c.h.b16 %v255
  %v279 = vunpack.c.l.b16 %v256
  %v280 = vunpack.c.h.b16 %v256
  %v281 = vpack.c.b16 %v267, %v265
  %v282 = vpack.c.b16 %v268, %v266
  %v283 = vpack.c.b16 %v271, %v269
  %v284 = vpack.c.b16 %v272, %v270
  %v285 = vpack.c.b16 %v275, %v273
  %v286 = vpack.c.b16 %v276, %v274
  %v287 = vpack.c.b16 %v279, %v277
  %v288 = vpack.c.b16 %v280, %v278
  %vm297 = vcmask 523264
  %v299 = vsel %vm297, %v247, 0
  %301 = vmatprep.subr.bf16.mxu0 %v282
  %302 = vmatpush1.bf16.msra.mxu0 %v281
  %303 = vmatprep.subr.bf16.mxu0 %v284
  %304 = vmatpush1.bf16.msra.mxu0 %v283
  %305 = vmatprep.subr.bf16.mxu0 %v286
  %306 = vmatpush1.bf16.msra.mxu0 %v285
  %307 = vmatprep.subr.bf16.mxu0 %v288
  %308 = vmatpush1.bf16.msra.mxu0 %v287
  %309 = vmatprep.subr.bf16.mxu0 0
  %310 = vmatpush1.bf16.msra.mxu0 0
  %311 = vmatprep.subr.bf16.mxu0 0
  %312 = vmatpush1.bf16.msra.mxu0 0
  %313 = vmatprep.subr.bf16.mxu0 0
  %314 = vmatpush1.bf16.msra.mxu0 0
  %315 = vmatprep.subr.bf16.mxu0 0
  %316 = vmatpush1.bf16.msra.mxu0 0
  %317 = vmatprep.subr.bf16.mxu0 0
  %318 = vmatpush1.bf16.msra.mxu0 0
  %319 = vmatprep.subr.bf16.mxu0 0
  %320 = vmatpush1.bf16.msra.mxu0 0
  %321 = vmatprep.subr.bf16.mxu0 0
  %322 = vmatpush1.bf16.msra.mxu0 0
  %323 = vmatprep.subr.bf16.mxu0 0
  %324 = vmatpush1.bf16.msra.mxu0 0
  %325 = vmatprep.subr.bf16.mxu0 0
  %326 = vmatpush1.bf16.msra.mxu0 0
  %327 = vmatprep.subr.bf16.mxu0 0
  %328 = vmatpush1.bf16.msra.mxu0 0
  %329 = vmatprep.subr.bf16.mxu0 0
  %330 = vmatpush1.bf16.msra.mxu0 0
  %331 = vmatprep.subr.bf16.mxu0 0
  %332 = vmatpush1.bf16.msra.mxu0 0
  %333 = vmatprep.mubr.bf16.mxu0 0
  %334 = vmatmul.mubr.bf16.gmra.mrb[0].mxu0 %v299
  %v335 = vpop.f32.mrb[0].mxu0
  %v336 = vadd.f32 0.0, %v335
  %v337 = vpop.f32.mrb[0].mxu0
  %v338 = vadd.f32 0.0, %v337
  %v339 = vpop.f32.mrb[0].mxu0
  %v340 = vpop.f32.mrb[0].mxu0
  %341 = vdwg.mxu0
  %v350 = vunpack.c.l.b16 %v190
  %v351 = vunpack.c.h.b16 %v190
  %v352 = vunpack.c.l.b16 %v191
  %v353 = vunpack.c.h.b16 %v191
  %v354 = vunpack.c.l.b16 %v192
  %v355 = vunpack.c.h.b16 %v192
  %v356 = vunpack.c.l.b16 %v193
  %v357 = vunpack.c.h.b16 %v193
  %v358 = vunpack.c.l.b16 %v194
  %v359 = vunpack.c.h.b16 %v194
  %v360 = vunpack.c.l.b16 %v195
  %v361 = vunpack.c.h.b16 %v195
  %v362 = vunpack.c.l.b16 %v196
  %v363 = vunpack.c.h.b16 %v196
  %v364 = vunpack.c.l.b16 %v197
  %v365 = vunpack.c.h.b16 %v197
  %v366 = vpack.c.b16 %v352, %v350
  %v367 = vpack.c.b16 %v353, %v351
  %v368 = vpack.c.b16 %v356, %v354
  %v369 = vpack.c.b16 %v357, %v355
  %v370 = vpack.c.b16 %v360, %v358
  %v371 = vpack.c.b16 %v361, %v359
  %v372 = vpack.c.b16 %v364, %v362
  %v373 = vpack.c.b16 %v365, %v363
  %v383 = vsel %vm297, %v189, 0
  %385 = vmatprep.subr.bf16.mxu0 %v367
  %386 = vmatpush1.bf16.msra.mxu0 %v366
  %387 = vmatprep.subr.bf16.mxu0 %v369
  %388 = vmatpush1.bf16.msra.mxu0 %v368
  %389 = vmatprep.subr.bf16.mxu0 %v371
  %390 = vmatpush1.bf16.msra.mxu0 %v370
  %391 = vmatprep.subr.bf16.mxu0 %v373
  %392 = vmatpush1.bf16.msra.mxu0 %v372
  %393 = vmatprep.subr.bf16.mxu0 0
  %394 = vmatpush1.bf16.msra.mxu0 0
  %395 = vmatprep.subr.bf16.mxu0 0
  %396 = vmatpush1.bf16.msra.mxu0 0
  %397 = vmatprep.subr.bf16.mxu0 0
  %398 = vmatpush1.bf16.msra.mxu0 0
  %399 = vmatprep.subr.bf16.mxu0 0
  %400 = vmatpush1.bf16.msra.mxu0 0
  %401 = vmatprep.subr.bf16.mxu0 0
  %402 = vmatpush1.bf16.msra.mxu0 0
  %403 = vmatprep.subr.bf16.mxu0 0
  %404 = vmatpush1.bf16.msra.mxu0 0
  %405 = vmatprep.subr.bf16.mxu0 0
  %406 = vmatpush1.bf16.msra.mxu0 0
  %407 = vmatprep.subr.bf16.mxu0 0
  %408 = vmatpush1.bf16.msra.mxu0 0
  %409 = vmatprep.subr.bf16.mxu0 0
  %410 = vmatpush1.bf16.msra.mxu0 0
  %411 = vmatprep.subr.bf16.mxu0 0
  %412 = vmatpush1.bf16.msra.mxu0 0
  %413 = vmatprep.subr.bf16.mxu0 0
  %414 = vmatpush1.bf16.msra.mxu0 0
  %415 = vmatprep.subr.bf16.mxu0 0
  %416 = vmatpush1.bf16.msra.mxu0 0
  %417 = vmatprep.mubr.bf16.mxu0 0
  %418 = vmatmul.mubr.bf16.gmra.mrb[0].mxu0 %v383
  %v419 = vpop.f32.mrb[0].mxu0
  %v420 = vadd.f32 %v336, %v419
  %v421 = vpop.f32.mrb[0].mxu0
  %v422 = vadd.f32 %v338, %v421
  %v423 = vpop.f32.mrb[0].mxu0
  %v424 = vpop.f32.mrb[0].mxu0
  %425 = vdwg.mxu0
  %v426 = vrot.slane %v115, 5
  %v428 = vrot.slane %v182, 4
  %v430 = vsel %vm187, %v426, %v428
  %v431 = vpack.c.bf16 %v430, %v430
  %s432 = scalar_lea.vmem %s3, 320
  %v433 = vld [vmem:[%s432] sm:$0xff]
  %v434 = vld [vmem:[%s432 + $0x8] sm:$0xff]
  %v435 = vld [vmem:[%s432 + $0x10] sm:$0xff]
  %v436 = vld [vmem:[%s432 + $0x18] sm:$0xff]
  %v437 = vld [vmem:[%s432 + $0x20] sm:$0xff]
  %v438 = vld [vmem:[%s432 + $0x28] sm:$0xff]
  %v439 = vld [vmem:[%s432 + $0x30] sm:$0xff]
  %v440 = vld [vmem:[%s432 + $0x38] sm:$0xff]
  %v449 = vunpack.c.l.b16 %v433
  %v450 = vunpack.c.h.b16 %v433
  %v451 = vunpack.c.l.b16 %v434
  %v452 = vunpack.c.h.b16 %v434
  %v453 = vunpack.c.l.b16 %v435
  %v454 = vunpack.c.h.b16 %v435
  %v455 = vunpack.c.l.b16 %v436
  %v456 = vunpack.c.h.b16 %v436
  %v457 = vunpack.c.l.b16 %v437
  %v458 = vunpack.c.h.b16 %v437
  %v459 = vunpack.c.l.b16 %v438
  %v460 = vunpack.c.h.b16 %v438
  %v461 = vunpack.c.l.b16 %v439
  %v462 = vunpack.c.h.b16 %v439
  %v463 = vunpack.c.l.b16 %v440
  %v464 = vunpack.c.h.b16 %v440
  %v465 = vpack.c.b16 %v451, %v449
  %v466 = vpack.c.b16 %v452, %v450
  %v467 = vpack.c.b16 %v455, %v453
  %v468 = vpack.c.b16 %v456, %v454
  %v469 = vpack.c.b16 %v459, %v457
  %v470 = vpack.c.b16 %v460, %v458
  %v471 = vpack.c.b16 %v463, %v461
  %v472 = vpack.c.b16 %v464, %v462
  %v482 = vsel %vm297, %v431, 0
  %484 = vmatprep.subr.bf16.mxu0 %v466
  %485 = vmatpush1.bf16.msra.mxu0 %v465
  %486 = vmatprep.subr.bf16.mxu0 %v468
  %487 = vmatpush1.bf16.msra.mxu0 %v467
  %488 = vmatprep.subr.bf16.mxu0 %v470
  %489 = vmatpush1.bf16.msra.mxu0 %v469
  %490 = vmatprep.subr.bf16.mxu0 %v472
  %491 = vmatpush1.bf16.msra.mxu0 %v471
  %492 = vmatprep.subr.bf16.mxu0 0
  %493 = vmatpush1.bf16.msra.mxu0 0
  %494 = vmatprep.subr.bf16.mxu0 0
  %495 = vmatpush1.bf16.msra.mxu0 0
  %496 = vmatprep.subr.bf16.mxu0 0
  %497 = vmatpush1.bf16.msra.mxu0 0
  %498 = vmatprep.subr.bf16.mxu0 0
  %499 = vmatpush1.bf16.msra.mxu0 0
  %500 = vmatprep.subr.bf16.mxu0 0
  %501 = vmatpush1.bf16.msra.mxu0 0
  %502 = vmatprep.subr.bf16.mxu0 0
  %503 = vmatpush1.bf16.msra.mxu0 0
  %504 = vmatprep.subr.bf16.mxu0 0
  %505 = vmatpush1.bf16.msra.mxu0 0
  %506 = vmatprep.subr.bf16.mxu0 0
  %507 = vmatpush1.bf16.msra.mxu0 0
  %508 = vmatprep.subr.bf16.mxu0 0
  %509 = vmatpush1.bf16.msra.mxu0 0
  %510 = vmatprep.subr.bf16.mxu0 0
  %511 = vmatpush1.bf16.msra.mxu0 0
  %512 = vmatprep.subr.bf16.mxu0 0
  %513 = vmatpush1.bf16.msra.mxu0 0
  %514 = vmatprep.subr.bf16.mxu0 0
  %515 = vmatpush1.bf16.msra.mxu0 0
  %516 = vmatprep.mubr.bf16.mxu0 0
  %517 = vmatmul.mubr.bf16.gmra.mrb[0].mxu0 %v482
  %v518 = vpop.f32.mrb[0].mxu0
  %v519 = vadd.f32 0.0, %v518
  %v520 = vpop.f32.mrb[0].mxu0
  %v521 = vadd.f32 0.0, %v520
  %v522 = vpop.f32.mrb[0].mxu0
  %v523 = vpop.f32.mrb[0].mxu0
  %524 = vdwg.mxu0
  %v533 = vunpack.c.l.b16 %v204
  %v534 = vunpack.c.h.b16 %v204
  %v535 = vunpack.c.l.b16 %v205
  %v536 = vunpack.c.h.b16 %v205
  %v537 = vunpack.c.l.b16 %v206
  %v538 = vunpack.c.h.b16 %v206
  %v539 = vunpack.c.l.b16 %v207
  %v540 = vunpack.c.h.b16 %v207
  %v541 = vunpack.c.l.b16 %v208
  %v542 = vunpack.c.h.b16 %v208
  %v543 = vunpack.c.l.b16 %v209
  %v544 = vunpack.c.h.b16 %v209
  %v545 = vunpack.c.l.b16 %v210
  %v546 = vunpack.c.h.b16 %v210
  %v547 = vunpack.c.l.b16 %v211
  %v548 = vunpack.c.h.b16 %v211
  %v549 = vpack.c.b16 %v535, %v533
  %v550 = vpack.c.b16 %v536, %v534
  %v551 = vpack.c.b16 %v539, %v537
  %v552 = vpack.c.b16 %v540, %v538
  %v553 = vpack.c.b16 %v543, %v541
  %v554 = vpack.c.b16 %v544, %v542
  %v555 = vpack.c.b16 %v547, %v545
  %v556 = vpack.c.b16 %v548, %v546
  %v566 = vsel %vm297, %v202, 0
  %568 = vmatprep.subr.bf16.mxu0 %v550
  %569 = vmatpush1.bf16.msra.mxu0 %v549
  %570 = vmatprep.subr.bf16.mxu0 %v552
  %571 = vmatpush1.bf16.msra.mxu0 %v551
  %572 = vmatprep.subr.bf16.mxu0 %v554
  %573 = vmatpush1.bf16.msra.mxu0 %v553
  %574 = vmatprep.subr.bf16.mxu0 %v556
  %575 = vmatpush1.bf16.msra.mxu0 %v555
  %576 = vmatprep.subr.bf16.mxu0 0
  %577 = vmatpush1.bf16.msra.mxu0 0
  %578 = vmatprep.subr.bf16.mxu0 0
  %579 = vmatpush1.bf16.msra.mxu0 0
  %580 = vmatprep.subr.bf16.mxu0 0
  %581 = vmatpush1.bf16.msra.mxu0 0
  %582 = vmatprep.subr.bf16.mxu0 0
  %583 = vmatpush1.bf16.msra.mxu0 0
  %584 = vmatprep.subr.bf16.mxu0 0
  %585 = vmatpush1.bf16.msra.mxu0 0
  %586 = vmatprep.subr.bf16.mxu0 0
  %587 = vmatpush1.bf16.msra.mxu0 0
  %588 = vmatprep.subr.bf16.mxu0 0
  %589 = vmatpush1.bf16.msra.mxu0 0
  %590 = vmatprep.subr.bf16.mxu0 0
  %591 = vmatpush1.bf16.msra.mxu0 0
  %592 = vmatprep.subr.bf16.mxu0 0
  %593 = vmatpush1.bf16.msra.mxu0 0
  %594 = vmatprep.subr.bf16.mxu0 0
  %595 = vmatpush1.bf16.msra.mxu0 0
  %596 = vmatprep.subr.bf16.mxu0 0
  %597 = vmatpush1.bf16.msra.mxu0 0
  %598 = vmatprep.subr.bf16.mxu0 0
  %599 = vmatpush1.bf16.msra.mxu0 0
  %600 = vmatprep.mubr.bf16.mxu0 0
  %601 = vmatmul.mubr.bf16.gmra.mrb[0].mxu0 %v566
  %v602 = vpop.f32.mrb[0].mxu0
  %v603 = vadd.f32 %v519, %v602
  %v604 = vpop.f32.mrb[0].mxu0
  %v605 = vadd.f32 %v521, %v604
  %v606 = vpop.f32.mrb[0].mxu0
  %v607 = vpop.f32.mrb[0].mxu0
  %608 = vdwg.mxu0
  %v609 = vrot.slane %v115, 6
  %v611 = vrot.slane %v182, 5
  %v613 = vsel %vm187, %v609, %v611
  %v614 = vpack.c.bf16 %v613, %v613
  %s615 = scalar_lea.vmem %s3, 384
  %v616 = vld [vmem:[%s615] sm:$0xff]
  %v617 = vld [vmem:[%s615 + $0x8] sm:$0xff]
  %v618 = vld [vmem:[%s615 + $0x10] sm:$0xff]
  %v619 = vld [vmem:[%s615 + $0x18] sm:$0xff]
  %v620 = vld [vmem:[%s615 + $0x20] sm:$0xff]
  %v621 = vld [vmem:[%s615 + $0x28] sm:$0xff]
  %v622 = vld [vmem:[%s615 + $0x30] sm:$0xff]
  %v623 = vld [vmem:[%s615 + $0x38] sm:$0xff]
  %v632 = vunpack.c.l.b16 %v616
  %v633 = vunpack.c.h.b16 %v616
  %v634 = vunpack.c.l.b16 %v617
  %v635 = vunpack.c.h.b16 %v617
  %v636 = vunpack.c.l.b16 %v618
  %v637 = vunpack.c.h.b16 %v618
  %v638 = vunpack.c.l.b16 %v619
  %v639 = vunpack.c.h.b16 %v619
  %v640 = vunpack.c.l.b16 %v620
  %v641 = vunpack.c.h.b16 %v620
  %v642 = vunpack.c.l.b16 %v621
  %v643 = vunpack.c.h.b16 %v621
  %v644 = vunpack.c.l.b16 %v622
  %v645 = vunpack.c.h.b16 %v622
  %v646 = vunpack.c.l.b16 %v623
  %v647 = vunpack.c.h.b16 %v623
  %v648 = vpack.c.b16 %v634, %v632
  %v649 = vpack.c.b16 %v635, %v633
  %v650 = vpack.c.b16 %v638, %v636
  %v651 = vpack.c.b16 %v639, %v637
  %v652 = vpack.c.b16 %v642, %v640
  %v653 = vpack.c.b16 %v643, %v641
  %v654 = vpack.c.b16 %v646, %v644
  %v655 = vpack.c.b16 %v647, %v645
  %v665 = vsel %vm297, %v614, 0
  %667 = vmatprep.subr.bf16.mxu0 %v649
  %668 = vmatpush1.bf16.msra.mxu0 %v648
  %669 = vmatprep.subr.bf16.mxu0 %v651
  %670 = vmatpush1.bf16.msra.mxu0 %v650
  %671 = vmatprep.subr.bf16.mxu0 %v653
  %672 = vmatpush1.bf16.msra.mxu0 %v652
  %673 = vmatprep.subr.bf16.mxu0 %v655
  %674 = vmatpush1.bf16.msra.mxu0 %v654
  %675 = vmatprep.subr.bf16.mxu0 0
  %676 = vmatpush1.bf16.msra.mxu0 0
  %677 = vmatprep.subr.bf16.mxu0 0
  %678 = vmatpush1.bf16.msra.mxu0 0
  %679 = vmatprep.subr.bf16.mxu0 0
  %680 = vmatpush1.bf16.msra.mxu0 0
  %681 = vmatprep.subr.bf16.mxu0 0
  %682 = vmatpush1.bf16.msra.mxu0 0
  %683 = vmatprep.subr.bf16.mxu0 0
  %684 = vmatpush1.bf16.msra.mxu0 0
  %685 = vmatprep.subr.bf16.mxu0 0
  %686 = vmatpush1.bf16.msra.mxu0 0
  %687 = vmatprep.subr.bf16.mxu0 0
  %688 = vmatpush1.bf16.msra.mxu0 0
  %689 = vmatprep.subr.bf16.mxu0 0
  %690 = vmatpush1.bf16.msra.mxu0 0
  %691 = vmatprep.subr.bf16.mxu0 0
  %692 = vmatpush1.bf16.msra.mxu0 0
  %693 = vmatprep.subr.bf16.mxu0 0
  %694 = vmatpush1.bf16.msra.mxu0 0
  %695 = vmatprep.subr.bf16.mxu0 0
  %696 = vmatpush1.bf16.msra.mxu0 0
  %697 = vmatprep.subr.bf16.mxu0 0
  %698 = vmatpush1.bf16.msra.mxu0 0
  %699 = vmatprep.mubr.bf16.mxu0 0
  %700 = vmatmul.mubr.bf16.gmra.mrb[0].mxu0 %v665
  %v701 = vpop.f32.mrb[0].mxu0
  %v702 = vadd.f32 0.0, %v701
  %v703 = vpop.f32.mrb[0].mxu0
  %v704 = vadd.f32 0.0, %v703
  %v705 = vpop.f32.mrb[0].mxu0
  %v706 = vpop.f32.mrb[0].mxu0
  %707 = vdwg.mxu0
  %v716 = vunpack.c.l.b16 %v219
  %v717 = vunpack.c.h.b16 %v219
  %v718 = vunpack.c.l.b16 %v220
  %v719 = vunpack.c.h.b16 %v220
  %v720 = vunpack.c.l.b16 %v221
  %v721 = vunpack.c.h.b16 %v221
  %v722 = vunpack.c.l.b16 %v222
  %v723 = vunpack.c.h.b16 %v222
  %v724 = vunpack.c.l.b16 %v223
  %v725 = vunpack.c.h.b16 %v223
  %v726 = vunpack.c.l.b16 %v224
  %v727 = vunpack.c.h.b16 %v224
  %v728 = vunpack.c.l.b16 %v225
  %v729 = vunpack.c.h.b16 %v225
  %v730 = vunpack.c.l.b16 %v226
  %v731 = vunpack.c.h.b16 %v226
  %v732 = vpack.c.b16 %v718, %v716
  %v733 = vpack.c.b16 %v719, %v717
  %v734 = vpack.c.b16 %v722, %v720
  %v735 = vpack.c.b16 %v723, %v721
  %v736 = vpack.c.b16 %v726, %v724
  %v737 = vpack.c.b16 %v727, %v725
  %v738 = vpack.c.b16 %v730, %v728
  %v739 = vpack.c.b16 %v731, %v729
  %v749 = vsel %vm297, %v217, 0
  %751 = vmatprep.subr.bf16.mxu0 %v733
  %752 = vmatpush1.bf16.msra.mxu0 %v732
  %753 = vmatprep.subr.bf16.mxu0 %v735
  %754 = vmatpush1.bf16.msra.mxu0 %v734
  %755 = vmatprep.subr.bf16.mxu0 %v737
  %756 = vmatpush1.bf16.msra.mxu0 %v736
  %757 = vmatprep.subr.bf16.mxu0 %v739
  %758 = vmatpush1.bf16.msra.mxu0 %v738
  %759 = vmatprep.subr.bf16.mxu0 0
  %760 = vmatpush1.bf16.msra.mxu0 0
  %761 = vmatprep.subr.bf16.mxu0 0
  %762 = vmatpush1.bf16.msra.mxu0 0
  %763 = vmatprep.subr.bf16.mxu0 0
  %764 = vmatpush1.bf16.msra.mxu0 0
  %765 = vmatprep.subr.bf16.mxu0 0
  %766 = vmatpush1.bf16.msra.mxu0 0
  %767 = vmatprep.subr.bf16.mxu0 0
  %768 = vmatpush1.bf16.msra.mxu0 0
  %769 = vmatprep.subr.bf16.mxu0 0
  %770 = vmatpush1.bf16.msra.mxu0 0
  %771 = vmatprep.subr.bf16.mxu0 0
  %772 = vmatpush1.bf16.msra.mxu0 0
  %773 = vmatprep.subr.bf16.mxu0 0
  %774 = vmatpush1.bf16.msra.mxu0 0
  %775 = vmatprep.subr.bf16.mxu0 0
  %776 = vmatpush1.bf16.msra.mxu0 0
  %777 = vmatprep.subr.bf16.mxu0 0
  %778 = vmatpush1.bf16.msra.mxu0 0
  %779 = vmatprep.subr.bf16.mxu0 0
  %780 = vmatpush1.bf16.msra.mxu0 0
  %781 = vmatprep.subr.bf16.mxu0 0
  %782 = vmatpush1.bf16.msra.mxu0 0
  %783 = vmatprep.mubr.bf16.mxu0 0
  %784 = vmatmul.mubr.bf16.gmra.mrb[0].mxu0 %v749
  %v785 = vpop.f32.mrb[0].mxu0
  %v786 = vadd.f32 %v702, %v785
  %v787 = vpop.f32.mrb[0].mxu0
  %v788 = vadd.f32 %v704, %v787
  %v789 = vpop.f32.mrb[0].mxu0
  %v790 = vpop.f32.mrb[0].mxu0
  %791 = vdwg.mxu0
  %v792 = vrot.slane %v115, 7
  %v794 = vrot.slane %v182, 6
  %v796 = vsel %vm187, %v792, %v794
  %v797 = vpack.c.bf16 %v796, %v796
  %s798 = scalar_lea.vmem %s3, 448
  %v799 = vld [vmem:[%s798] sm:$0xff]
  %v800 = vld [vmem:[%s798 + $0x8] sm:$0xff]
  %v801 = vld [vmem:[%s798 + $0x10] sm:$0xff]
  %v802 = vld [vmem:[%s798 + $0x18] sm:$0xff]
  %v803 = vld [vmem:[%s798 + $0x20] sm:$0xff]
  %v804 = vld [vmem:[%s798 + $0x28] sm:$0xff]
  %v805 = vld [vmem:[%s798 + $0x30] sm:$0xff]
  %v806 = vld [vmem:[%s798 + $0x38] sm:$0xff]
  %v815 = vunpack.c.l.b16 %v799
  %v816 = vunpack.c.h.b16 %v799
  %v817 = vunpack.c.l.b16 %v800
  %v818 = vunpack.c.h.b16 %v800
  %v819 = vunpack.c.l.b16 %v801
  %v820 = vunpack.c.h.b16 %v801
  %v821 = vunpack.c.l.b16 %v802
  %v822 = vunpack.c.h.b16 %v802
  %v823 = vunpack.c.l.b16 %v803
  %v824 = vunpack.c.h.b16 %v803
  %v825 = vunpack.c.l.b16 %v804
  %v826 = vunpack.c.h.b16 %v804
  %v827 = vunpack.c.l.b16 %v805
  %v828 = vunpack.c.h.b16 %v805
  %v829 = vunpack.c.l.b16 %v806
  %v830 = vunpack.c.h.b16 %v806
  %v831 = vpack.c.b16 %v817, %v815
  %v832 = vpack.c.b16 %v818, %v816
  %v833 = vpack.c.b16 %v821, %v819
  %v834 = vpack.c.b16 %v822, %v820
  %v835 = vpack.c.b16 %v825, %v823
  %v836 = vpack.c.b16 %v826, %v824
  %v837 = vpack.c.b16 %v829, %v827
  %v838 = vpack.c.b16 %v830, %v828
  %v848 = vsel %vm297, %v797, 0
  %850 = vmatprep.subr.bf16.mxu0 %v832
  %851 = vmatpush1.bf16.msra.mxu0 %v831
  %852 = vmatprep.subr.bf16.mxu0 %v834
  %853 = vmatpush1.bf16.msra.mxu0 %v833
  %854 = vmatprep.subr.bf16.mxu0 %v836
  %855 = vmatpush1.bf16.msra.mxu0 %v835
  %856 = vmatprep.subr.bf16.mxu0 %v838
  %857 = vmatpush1.bf16.msra.mxu0 %v837
  %858 = vmatprep.subr.bf16.mxu0 0
  %859 = vmatpush1.bf16.msra.mxu0 0
  %860 = vmatprep.subr.bf16.mxu0 0
  %861 = vmatpush1.bf16.msra.mxu0 0
  %862 = vmatprep.subr.bf16.mxu0 0
  %863 = vmatpush1.bf16.msra.mxu0 0
  %864 = vmatprep.subr.bf16.mxu0 0
  %865 = vmatpush1.bf16.msra.mxu0 0
  %866 = vmatprep.subr.bf16.mxu0 0
  %867 = vmatpush1.bf16.msra.mxu0 0
  %868 = vmatprep.subr.bf16.mxu0 0
  %869 = vmatpush1.bf16.msra.mxu0 0
  %870 = vmatprep.subr.bf16.mxu0 0
  %871 = vmatpush1.bf16.msra.mxu0 0
  %872 = vmatprep.subr.bf16.mxu0 0
  %873 = vmatpush1.bf16.msra.mxu0 0
  %874 = vmatprep.subr.bf16.mxu0 0
  %875 = vmatpush1.bf16.msra.mxu0 0
  %876 = vmatprep.subr.bf16.mxu0 0
  %877 = vmatpush1.bf16.msra.mxu0 0
  %878 = vmatprep.subr.bf16.mxu0 0
  %879 = vmatpush1.bf16.msra.mxu0 0
  %880 = vmatprep.subr.bf16.mxu0 0
  %881 = vmatpush1.bf16.msra.mxu0 0
  %882 = vmatprep.mubr.bf16.mxu0 0
  %883 = vmatmul.mubr.bf16.gmra.mrb[0].mxu0 %v848
  %v884 = vpop.f32.mrb[0].mxu0
  %v885 = vadd.f32 0.0, %v884
  %v886 = vpop.f32.mrb[0].mxu0
  %v887 = vadd.f32 0.0, %v886
  %v888 = vpop.f32.mrb[0].mxu0
  %v889 = vpop.f32.mrb[0].mxu0
  %890 = vdwg.mxu0
  %v899 = vunpack.c.l.b16 %v234
  %v900 = vunpack.c.h.b16 %v234
  %v901 = vunpack.c.l.b16 %v235
  %v902 = vunpack.c.h.b16 %v235
  %v903 = vunpack.c.l.b16 %v236
  %v904 = vunpack.c.h.b16 %v236
  %v905 = vunpack.c.l.b16 %v237
  %v906 = vunpack.c.h.b16 %v237
  %v907 = vunpack.c.l.b16 %v238
  %v908 = vunpack.c.h.b16 %v238
  %v909 = vunpack.c.l.b16 %v239
  %v910 = vunpack.c.h.b16 %v239
  %v911 = vunpack.c.l.b16 %v240
  %v912 = vunpack.c.h.b16 %v240
  %v913 = vunpack.c.l.b16 %v241
  %v914 = vunpack.c.h.b16 %v241
  %v915 = vpack.c.b16 %v901, %v899
  %v916 = vpack.c.b16 %v902, %v900
  %v917 = vpack.c.b16 %v905, %v903
  %v918 = vpack.c.b16 %v906, %v904
  %v919 = vpack.c.b16 %v909, %v907
  %v920 = vpack.c.b16 %v910, %v908
  %v921 = vpack.c.b16 %v913, %v911
  %v922 = vpack.c.b16 %v914, %v912
  %v932 = vsel %vm297, %v232, 0
  %934 = vmatprep.subr.bf16.mxu0 %v916
  %935 = vmatpush1.bf16.msra.mxu0 %v915
  %936 = vmatprep.subr.bf16.mxu0 %v918
  %937 = vmatpush1.bf16.msra.mxu0 %v917
  %938 = vmatprep.subr.bf16.mxu0 %v920
  %939 = vmatpush1.bf16.msra.mxu0 %v919
  %940 = vmatprep.subr.bf16.mxu0 %v922
  %941 = vmatpush1.bf16.msra.mxu0 %v921
  %942 = vmatprep.subr.bf16.mxu0 0
  %943 = vmatpush1.bf16.msra.mxu0 0
  %944 = vmatprep.subr.bf16.mxu0 0
  %945 = vmatpush1.bf16.msra.mxu0 0
  %946 = vmatprep.subr.bf16.mxu0 0
  %947 = vmatpush1.bf16.msra.mxu0 0
  %948 = vmatprep.subr.bf16.mxu0 0
  %949 = vmatpush1.bf16.msra.mxu0 0
  %950 = vmatprep.subr.bf16.mxu0 0
  %951 = vmatpush1.bf16.msra.mxu0 0
  %952 = vmatprep.subr.bf16.mxu0 0
  %953 = vmatpush1.bf16.msra.mxu0 0
  %954 = vmatprep.subr.bf16.mxu0 0
  %955 = vmatpush1.bf16.msra.mxu0 0
  %956 = vmatprep.subr.bf16.mxu0 0
  %957 = vmatpush1.bf16.msra.mxu0 0
  %958 = vmatprep.subr.bf16.mxu0 0
  %959 = vmatpush1.bf16.msra.mxu0 0
  %960 = vmatprep.subr.bf16.mxu0 0
  %961 = vmatpush1.bf16.msra.mxu0 0
  %962 = vmatprep.subr.bf16.mxu0 0
  %963 = vmatpush1.bf16.msra.mxu0 0
  %964 = vmatprep.subr.bf16.mxu0 0
  %965 = vmatpush1.bf16.msra.mxu0 0
  %966 = vmatprep.mubr.bf16.mxu0 0
  %967 = vmatmul.mubr.bf16.gmra.mrb[0].mxu0 %v932
  %v968 = vpop.f32.mrb[0].mxu0
  %v969 = vadd.f32 %v885, %v968
  %v970 = vpop.f32.mrb[0].mxu0
  %v971 = vadd.f32 %v887, %v970
  %v972 = vpop.f32.mrb[0].mxu0
  %v973 = vpop.f32.mrb[0].mxu0
  %974 = vdwg.mxu0
  %v976 = vrot.slane %v183, 7
  %v978 = vsel %vm187, %v116, %v976
  %v979 = vpack.c.bf16 %v978, %v978
  %s980 = scalar_lea.vmem %s3, 512
  %v981 = vld [vmem:[%s980] sm:$0xff]
  %v982 = vld [vmem:[%s980 + $0x8] sm:$0xff]
  %v983 = vld [vmem:[%s980 + $0x10] sm:$0xff]
  %v984 = vld [vmem:[%s980 + $0x18] sm:$0xff]
  %v985 = vld [vmem:[%s980 + $0x20] sm:$0xff]
  %v986 = vld [vmem:[%s980 + $0x28] sm:$0xff]
  %v987 = vld [vmem:[%s980 + $0x30] sm:$0xff]
  %v988 = vld [vmem:[%s980 + $0x38] sm:$0xff]
  %v997 = vunpack.c.l.b16 %v981
  %v998 = vunpack.c.h.b16 %v981
  %v999 = vunpack.c.l.b16 %v982
  %v1000 = vunpack.c.h.b16 %v982
  %v1001 = vunpack.c.l.b16 %v983
  %v1002 = vunpack.c.h.b16 %v983
  %v1003 = vunpack.c.l.b16 %v984
  %v1004 = vunpack.c.h.b16 %v984
  %v1005 = vunpack.c.l.b16 %v985
  %v1006 = vunpack.c.h.b16 %v985
  %v1007 = vunpack.c.l.b16 %v986
  %v1008 = vunpack.c.h.b16 %v986
  %v1009 = vunpack.c.l.b16 %v987
  %v1010 = vunpack.c.h.b16 %v987
  %v1011 = vunpack.c.l.b16 %v988
  %v1012 = vunpack.c.h.b16 %v988
  %v1013 = vpack.c.b16 %v999, %v997
  %v1014 = vpack.c.b16 %v1000, %v998
  %v1015 = vpack.c.b16 %v1003, %v1001
  %v1016 = vpack.c.b16 %v1004, %v1002
  %v1017 = vpack.c.b16 %v1007, %v1005
  %v1018 = vpack.c.b16 %v1008, %v1006
  %v1019 = vpack.c.b16 %v1011, %v1009
  %v1020 = vpack.c.b16 %v1012, %v1010
  %v1030 = vsel %vm297, %v979, 0
  %1032 = vmatprep.subr.bf16.mxu0 %v1014
  %1033 = vmatpush1.bf16.msra.mxu0 %v1013
  %1034 = vmatprep.subr.bf16.mxu0 %v1016
  %1035 = vmatpush1.bf16.msra.mxu0 %v1015
  %1036 = vmatprep.subr.bf16.mxu0 %v1018
  %1037 = vmatpush1.bf16.msra.mxu0 %v1017
  %1038 = vmatprep.subr.bf16.mxu0 %v1020
  %1039 = vmatpush1.bf16.msra.mxu0 %v1019
  %1040 = vmatprep.subr.bf16.mxu0 0
  %1041 = vmatpush1.bf16.msra.mxu0 0
  %1042 = vmatprep.subr.bf16.mxu0 0
  %1043 = vmatpush1.bf16.msra.mxu0 0
  %1044 = vmatprep.subr.bf16.mxu0 0
  %1045 = vmatpush1.bf16.msra.mxu0 0
  %1046 = vmatprep.subr.bf16.mxu0 0
  %1047 = vmatpush1.bf16.msra.mxu0 0
  %1048 = vmatprep.subr.bf16.mxu0 0
  %1049 = vmatpush1.bf16.msra.mxu0 0
  %1050 = vmatprep.subr.bf16.mxu0 0
  %1051 = vmatpush1.bf16.msra.mxu0 0
  %1052 = vmatprep.subr.bf16.mxu0 0
  %1053 = vmatpush1.bf16.msra.mxu0 0
  %1054 = vmatprep.subr.bf16.mxu0 0
  %1055 = vmatpush1.bf16.msra.mxu0 0
  %1056 = vmatprep.subr.bf16.mxu0 0
  %1057 = vmatpush1.bf16.msra.mxu0 0
  %1058 = vmatprep.subr.bf16.mxu0 0
  %1059 = vmatpush1.bf16.msra.mxu0 0
  %1060 = vmatprep.subr.bf16.mxu0 0
  %1061 = vmatpush1.bf16.msra.mxu0 0
  %1062 = vmatprep.subr.bf16.mxu0 0
  %1063 = vmatpush1.bf16.msra.mxu0 0
  %1064 = vmatprep.mubr.bf16.mxu0 0
  %1065 = vmatmul.mubr.bf16.gmra.mrb[0].mxu0 %v1030
  %v1066 = vpop.f32.mrb[0].mxu0
  %v1067 = vadd.f32 0.0, %v1066
  %v1068 = vpop.f32.mrb[0].mxu0
  %v1069 = vadd.f32 0.0, %v1068
  %v1070 = vpop.f32.mrb[0].mxu0
  %v1071 = vpop.f32.mrb[0].mxu0
  %1072 = vdwg.mxu0
  %v1073 = vadd.f32 %v420, %v1067
  %v1074 = vadd.f32 %v422, %v1069
  %v1076 = vrot.slane %v116, 1
  %v1078 = vsel %vm187, %v1076, %v183
  %v1079 = vpack.c.bf16 %v1078, %v1078
  %s1080 = scalar_lea.vmem %s3, 576
  %v1081 = vld [vmem:[%s1080] sm:$0xff]
  %v1082 = vld [vmem:[%s1080 + $0x8] sm:$0xff]
  %v1083 = vld [vmem:[%s1080 + $0x10] sm:$0xff]
  %v1084 = vld [vmem:[%s1080 + $0x18] sm:$0xff]
  %v1085 = vld [vmem:[%s1080 + $0x20] sm:$0xff]
  %v1086 = vld [vmem:[%s1080 + $0x28] sm:$0xff]
  %v1087 = vld [vmem:[%s1080 + $0x30] sm:$0xff]
  %v1088 = vld [vmem:[%s1080 + $0x38] sm:$0xff]
  %v1097 = vunpack.c.l.b16 %v1081
  %v1098 = vunpack.c.h.b16 %v1081
  %v1099 = vunpack.c.l.b16 %v1082
  %v1100 = vunpack.c.h.b16 %v1082
  %v1101 = vunpack.c.l.b16 %v1083
  %v1102 = vunpack.c.h.b16 %v1083
  %v1103 = vunpack.c.l.b16 %v1084
  %v1104 = vunpack.c.h.b16 %v1084
  %v1105 = vunpack.c.l.b16 %v1085
  %v1106 = vunpack.c.h.b16 %v1085
  %v1107 = vunpack.c.l.b16 %v1086
  %v1108 = vunpack.c.h.b16 %v1086
  %v1109 = vunpack.c.l.b16 %v1087
  %v1110 = vunpack.c.h.b16 %v1087
  %v1111 = vunpack.c.l.b16 %v1088
  %v1112 = vunpack.c.h.b16 %v1088
  %v1113 = vpack.c.b16 %v1099, %v1097
  %v1114 = vpack.c.b16 %v1100, %v1098
  %v1115 = vpack.c.b16 %v1103, %v1101
  %v1116 = vpack.c.b16 %v1104, %v1102
  %v1117 = vpack.c.b16 %v1107, %v1105
  %v1118 = vpack.c.b16 %v1108, %v1106
  %v1119 = vpack.c.b16 %v1111, %v1109
  %v1120 = vpack.c.b16 %v1112, %v1110
  %v1130 = vsel %vm297, %v1079, 0
  %1132 = vmatprep.subr.bf16.mxu0 %v1114
  %1133 = vmatpush1.bf16.msra.mxu0 %v1113
  %1134 = vmatprep.subr.bf16.mxu0 %v1116
  %1135 = vmatpush1.bf16.msra.mxu0 %v1115
  %1136 = vmatprep.subr.bf16.mxu0 %v1118
  %1137 = vmatpush1.bf16.msra.mxu0 %v1117
  %1138 = vmatprep.subr.bf16.mxu0 %v1120
  %1139 = vmatpush1.bf16.msra.mxu0 %v1119
  %1140 = vmatprep.subr.bf16.mxu0 0
  %1141 = vmatpush1.bf16.msra.mxu0 0
  %1142 = vmatprep.subr.bf16.mxu0 0
  %1143 = vmatpush1.bf16.msra.mxu0 0
  %1144 = vmatprep.subr.bf16.mxu0 0
  %1145 = vmatpush1.bf16.msra.mxu0 0
  %1146 = vmatprep.subr.bf16.mxu0 0
  %1147 = vmatpush1.bf16.msra.mxu0 0
  %1148 = vmatprep.subr.bf16.mxu0 0
  %1149 = vmatpush1.bf16.msra.mxu0 0
  %1150 = vmatprep.subr.bf16.mxu0 0
  %1151 = vmatpush1.bf16.msra.mxu0 0
  %1152 = vmatprep.subr.bf16.mxu0 0
  %1153 = vmatpush1.bf16.msra.mxu0 0
  %1154 = vmatprep.subr.bf16.mxu0 0
  %1155 = vmatpush1.bf16.msra.mxu0 0
  %1156 = vmatprep.subr.bf16.mxu0 0
  %1157 = vmatpush1.bf16.msra.mxu0 0
  %1158 = vmatprep.subr.bf16.mxu0 0
  %1159 = vmatpush1.bf16.msra.mxu0 0
  %1160 = vmatprep.subr.bf16.mxu0 0
  %1161 = vmatpush1.bf16.msra.mxu0 0
  %1162 = vmatprep.subr.bf16.mxu0 0
  %1163 = vmatpush1.bf16.msra.mxu0 0
  %1164 = vmatprep.mubr.bf16.mxu0 0
  %1165 = vmatmul.mubr.bf16.gmra.mrb[0].mxu0 %v1130
  %v1166 = vpop.f32.mrb[0].mxu0
  %v1167 = vadd.f32 0.0, %v1166
  %v1168 = vpop.f32.mrb[0].mxu0
  %v1169 = vadd.f32 0.0, %v1168
  %v1170 = vpop.f32.mrb[0].mxu0
  %v1171 = vpop.f32.mrb[0].mxu0
  %1172 = vdwg.mxu0
  %v1173 = vadd.f32 %v603, %v1167
  %v1174 = vadd.f32 %v605, %v1169
  %v1175 = vrot.slane %v116, 2
  %v1177 = vrot.slane %v183, 1
  %v1179 = vsel %vm187, %v1175, %v1177
  %v1180 = vpack.c.bf16 %v1179, %v1179
  %s1181 = scalar_lea.vmem %s3, 640
  %v1182 = vld [vmem:[%s1181] sm:$0xff]
  %v1183 = vld [vmem:[%s1181 + $0x8] sm:$0xff]
  %v1184 = vld [vmem:[%s1181 + $0x10] sm:$0xff]
  %v1185 = vld [vmem:[%s1181 + $0x18] sm:$0xff]
  %v1186 = vld [vmem:[%s1181 + $0x20] sm:$0xff]
  %v1187 = vld [vmem:[%s1181 + $0x28] sm:$0xff]
  %v1188 = vld [vmem:[%s1181 + $0x30] sm:$0xff]
  %v1189 = vld [vmem:[%s1181 + $0x38] sm:$0xff]
  %v1198 = vunpack.c.l.b16 %v1182
  %v1199 = vunpack.c.h.b16 %v1182
  %v1200 = vunpack.c.l.b16 %v1183
  %v1201 = vunpack.c.h.b16 %v1183
  %v1202 = vunpack.c.l.b16 %v1184
  %v1203 = vunpack.c.h.b16 %v1184
  %v1204 = vunpack.c.l.b16 %v1185
  %v1205 = vunpack.c.h.b16 %v1185
  %v1206 = vunpack.c.l.b16 %v1186
  %v1207 = vunpack.c.h.b16 %v1186
  %v1208 = vunpack.c.l.b16 %v1187
  %v1209 = vunpack.c.h.b16 %v1187
  %v1210 = vunpack.c.l.b16 %v1188
  %v1211 = vunpack.c.h.b16 %v1188
  %v1212 = vunpack.c.l.b16 %v1189
  %v1213 = vunpack.c.h.b16 %v1189
  %v1214 = vpack.c.b16 %v1200, %v1198
  %v1215 = vpack.c.b16 %v1201, %v1199
  %v1216 = vpack.c.b16 %v1204, %v1202
  %v1217 = vpack.c.b16 %v1205, %v1203
  %v1218 = vpack.c.b16 %v1208, %v1206
  %v1219 = vpack.c.b16 %v1209, %v1207
  %v1220 = vpack.c.b16 %v1212, %v1210
  %v1221 = vpack.c.b16 %v1213, %v1211
  %v1231 = vsel %vm297, %v1180, 0
  %1233 = vmatprep.subr.bf16.mxu0 %v1215
  %1234 = vmatpush1.bf16.msra.mxu0 %v1214
  %1235 = vmatprep.subr.bf16.mxu0 %v1217
  %1236 = vmatpush1.bf16.msra.mxu0 %v1216
  %1237 = vmatprep.subr.bf16.mxu0 %v1219
  %1238 = vmatpush1.bf16.msra.mxu0 %v1218
  %1239 = vmatprep.subr.bf16.mxu0 %v1221
  %1240 = vmatpush1.bf16.msra.mxu0 %v1220
  %1241 = vmatprep.subr.bf16.mxu0 0
  %1242 = vmatpush1.bf16.msra.mxu0 0
  %1243 = vmatprep.subr.bf16.mxu0 0
  %1244 = vmatpush1.bf16.msra.mxu0 0
  %1245 = vmatprep.subr.bf16.mxu0 0
  %1246 = vmatpush1.bf16.msra.mxu0 0
  %1247 = vmatprep.subr.bf16.mxu0 0
  %1248 = vmatpush1.bf16.msra.mxu0 0
  %1249 = vmatprep.subr.bf16.mxu0 0
  %1250 = vmatpush1.bf16.msra.mxu0 0
  %1251 = vmatprep.subr.bf16.mxu0 0
  %1252 = vmatpush1.bf16.msra.mxu0 0
  %1253 = vmatprep.subr.bf16.mxu0 0
  %1254 = vmatpush1.bf16.msra.mxu0 0
  %1255 = vmatprep.subr.bf16.mxu0 0
  %1256 = vmatpush1.bf16.msra.mxu0 0
  %1257 = vmatprep.subr.bf16.mxu0 0
  %1258 = vmatpush1.bf16.msra.mxu0 0
  %1259 = vmatprep.subr.bf16.mxu0 0
  %1260 = vmatpush1.bf16.msra.mxu0 0
  %1261 = vmatprep.subr.bf16.mxu0 0
  %1262 = vmatpush1.bf16.msra.mxu0 0
  %1263 = vmatprep.subr.bf16.mxu0 0
  %1264 = vmatpush1.bf16.msra.mxu0 0
  %1265 = vmatprep.mubr.bf16.mxu0 0
  %1266 = vmatmul.mubr.bf16.gmra.mrb[0].mxu0 %v1231
  %v1267 = vpop.f32.mrb[0].mxu0
  %v1268 = vadd.f32 0.0, %v1267
  %v1269 = vpop.f32.mrb[0].mxu0
  %v1270 = vadd.f32 0.0, %v1269
  %v1271 = vpop.f32.mrb[0].mxu0
  %v1272 = vpop.f32.mrb[0].mxu0
  %1273 = vdwg.mxu0
  %v1274 = vadd.f32 %v786, %v1268
  %v1275 = vadd.f32 %v788, %v1270
  %v1276 = vrot.slane %v116, 3
  %v1278 = vrot.slane %v183, 2
  %v1280 = vsel %vm187, %v1276, %v1278
  %v1281 = vpack.c.bf16 %v1280, %v1280
  %s1282 = scalar_lea.vmem %s3, 704
  %v1283 = vld [vmem:[%s1282] sm:$0xff]
  %v1284 = vld [vmem:[%s1282 + $0x8] sm:$0xff]
  %v1285 = vld [vmem:[%s1282 + $0x10] sm:$0xff]
  %v1286 = vld [vmem:[%s1282 + $0x18] sm:$0xff]
  %v1287 = vld [vmem:[%s1282 + $0x20] sm:$0xff]
  %v1288 = vld [vmem:[%s1282 + $0x28] sm:$0xff]
  %v1289 = vld [vmem:[%s1282 + $0x30] sm:$0xff]
  %v1290 = vld [vmem:[%s1282 + $0x38] sm:$0xff]
  %v1299 = vunpack.c.l.b16 %v1283
  %v1300 = vunpack.c.h.b16 %v1283
  %v1301 = vunpack.c.l.b16 %v1284
  %v1302 = vunpack.c.h.b16 %v1284
  %v1303 = vunpack.c.l.b16 %v1285
  %v1304 = vunpack.c.h.b16 %v1285
  %v1305 = vunpack.c.l.b16 %v1286
  %v1306 = vunpack.c.h.b16 %v1286
  %v1307 = vunpack.c.l.b16 %v1287
  %v1308 = vunpack.c.h.b16 %v1287
  %v1309 = vunpack.c.l.b16 %v1288
  %v1310 = vunpack.c.h.b16 %v1288
  %v1311 = vunpack.c.l.b16 %v1289
  %v1312 = vunpack.c.h.b16 %v1289
  %v1313 = vunpack.c.l.b16 %v1290
  %v1314 = vunpack.c.h.b16 %v1290
  %v1315 = vpack.c.b16 %v1301, %v1299
  %v1316 = vpack.c.b16 %v1302, %v1300
  %v1317 = vpack.c.b16 %v1305, %v1303
  %v1318 = vpack.c.b16 %v1306, %v1304
  %v1319 = vpack.c.b16 %v1309, %v1307
  %v1320 = vpack.c.b16 %v1310, %v1308
  %v1321 = vpack.c.b16 %v1313, %v1311
  %v1322 = vpack.c.b16 %v1314, %v1312
  %v1332 = vsel %vm297, %v1281, 0
  %1334 = vmatprep.subr.bf16.mxu0 %v1316
  %1335 = vmatpush1.bf16.msra.mxu0 %v1315
  %1336 = vmatprep.subr.bf16.mxu0 %v1318
  %1337 = vmatpush1.bf16.msra.mxu0 %v1317
  %1338 = vmatprep.subr.bf16.mxu0 %v1320
  %1339 = vmatpush1.bf16.msra.mxu0 %v1319
  %1340 = vmatprep.subr.bf16.mxu0 %v1322
  %1341 = vmatpush1.bf16.msra.mxu0 %v1321
  %1342 = vmatprep.subr.bf16.mxu0 0
  %1343 = vmatpush1.bf16.msra.mxu0 0
  %1344 = vmatprep.subr.bf16.mxu0 0
  %1345 = vmatpush1.bf16.msra.mxu0 0
  %1346 = vmatprep.subr.bf16.mxu0 0
  %1347 = vmatpush1.bf16.msra.mxu0 0
  %1348 = vmatprep.subr.bf16.mxu0 0
  %1349 = vmatpush1.bf16.msra.mxu0 0
  %1350 = vmatprep.subr.bf16.mxu0 0
  %1351 = vmatpush1.bf16.msra.mxu0 0
  %1352 = vmatprep.subr.bf16.mxu0 0
  %1353 = vmatpush1.bf16.msra.mxu0 0
  %1354 = vmatprep.subr.bf16.mxu0 0
  %1355 = vmatpush1.bf16.msra.mxu0 0
  %1356 = vmatprep.subr.bf16.mxu0 0
  %1357 = vmatpush1.bf16.msra.mxu0 0
  %1358 = vmatprep.subr.bf16.mxu0 0
  %1359 = vmatpush1.bf16.msra.mxu0 0
  %1360 = vmatprep.subr.bf16.mxu0 0
  %1361 = vmatpush1.bf16.msra.mxu0 0
  %1362 = vmatprep.subr.bf16.mxu0 0
  %1363 = vmatpush1.bf16.msra.mxu0 0
  %1364 = vmatprep.subr.bf16.mxu0 0
  %1365 = vmatpush1.bf16.msra.mxu0 0
  %1366 = vmatprep.mubr.bf16.mxu0 0
  %1367 = vmatmul.mubr.bf16.gmra.mrb[0].mxu0 %v1332
  %v1368 = vpop.f32.mrb[0].mxu0
  %v1369 = vadd.f32 0.0, %v1368
  %v1370 = vpop.f32.mrb[0].mxu0
  %v1371 = vadd.f32 0.0, %v1370
  %v1372 = vpop.f32.mrb[0].mxu0
  %v1373 = vpop.f32.mrb[0].mxu0
  %1374 = vdwg.mxu0
  %v1375 = vadd.f32 %v969, %v1369
  %v1376 = vadd.f32 %v971, %v1371
  %v1377 = vrot.slane %v116, 4
  %v1379 = vrot.slane %v183, 3
  %v1381 = vsel %vm187, %v1377, %v1379
  %v1382 = vpack.c.bf16 %v1381, %v1381
  %s1383 = scalar_lea.vmem %s3, 768
  %v1384 = vld [vmem:[%s1383] sm:$0xff]
  %v1385 = vld [vmem:[%s1383 + $0x8] sm:$0xff]
  %v1386 = vld [vmem:[%s1383 + $0x10] sm:$0xff]
  %v1387 = vld [vmem:[%s1383 + $0x18] sm:$0xff]
  %v1388 = vld [vmem:[%s1383 + $0x20] sm:$0xff]
  %v1389 = vld [vmem:[%s1383 + $0x28] sm:$0xff]
  %v1390 = vld [vmem:[%s1383 + $0x30] sm:$0xff]
  %v1391 = vld [vmem:[%s1383 + $0x38] sm:$0xff]
  %v1400 = vunpack.c.l.b16 %v1384
  %v1401 = vunpack.c.h.b16 %v1384
  %v1402 = vunpack.c.l.b16 %v1385
  %v1403 = vunpack.c.h.b16 %v1385
  %v1404 = vunpack.c.l.b16 %v1386
  %v1405 = vunpack.c.h.b16 %v1386
  %v1406 = vunpack.c.l.b16 %v1387
  %v1407 = vunpack.c.h.b16 %v1387
  %v1408 = vunpack.c.l.b16 %v1388
  %v1409 = vunpack.c.h.b16 %v1388
  %v1410 = vunpack.c.l.b16 %v1389
  %v1411 = vunpack.c.h.b16 %v1389
  %v1412 = vunpack.c.l.b16 %v1390
  %v1413 = vunpack.c.h.b16 %v1390
  %v1414 = vunpack.c.l.b16 %v1391
  %v1415 = vunpack.c.h.b16 %v1391
  %v1416 = vpack.c.b16 %v1402, %v1400
  %v1417 = vpack.c.b16 %v1403, %v1401
  %v1418 = vpack.c.b16 %v1406, %v1404
  %v1419 = vpack.c.b16 %v1407, %v1405
  %v1420 = vpack.c.b16 %v1410, %v1408
  %v1421 = vpack.c.b16 %v1411, %v1409
  %v1422 = vpack.c.b16 %v1414, %v1412
  %v1423 = vpack.c.b16 %v1415, %v1413
  %v1433 = vsel %vm297, %v1382, 0
  %1435 = vmatprep.subr.bf16.mxu0 %v1417
  %1436 = vmatpush1.bf16.msra.mxu0 %v1416
  %1437 = vmatprep.subr.bf16.mxu0 %v1419
  %1438 = vmatpush1.bf16.msra.mxu0 %v1418
  %1439 = vmatprep.subr.bf16.mxu0 %v1421
  %1440 = vmatpush1.bf16.msra.mxu0 %v1420
  %1441 = vmatprep.subr.bf16.mxu0 %v1423
  %1442 = vmatpush1.bf16.msra.mxu0 %v1422
  %1443 = vmatprep.subr.bf16.mxu0 0
  %1444 = vmatpush1.bf16.msra.mxu0 0
  %1445 = vmatprep.subr.bf16.mxu0 0
  %1446 = vmatpush1.bf16.msra.mxu0 0
  %1447 = vmatprep.subr.bf16.mxu0 0
  %1448 = vmatpush1.bf16.msra.mxu0 0
  %1449 = vmatprep.subr.bf16.mxu0 0
  %1450 = vmatpush1.bf16.msra.mxu0 0
  %1451 = vmatprep.subr.bf16.mxu0 0
  %1452 = vmatpush1.bf16.msra.mxu0 0
  %1453 = vmatprep.subr.bf16.mxu0 0
  %1454 = vmatpush1.bf16.msra.mxu0 0
  %1455 = vmatprep.subr.bf16.mxu0 0
  %1456 = vmatpush1.bf16.msra.mxu0 0
  %1457 = vmatprep.subr.bf16.mxu0 0
  %1458 = vmatpush1.bf16.msra.mxu0 0
  %1459 = vmatprep.subr.bf16.mxu0 0
  %1460 = vmatpush1.bf16.msra.mxu0 0
  %1461 = vmatprep.subr.bf16.mxu0 0
  %1462 = vmatpush1.bf16.msra.mxu0 0
  %1463 = vmatprep.subr.bf16.mxu0 0
  %1464 = vmatpush1.bf16.msra.mxu0 0
  %1465 = vmatprep.subr.bf16.mxu0 0
  %1466 = vmatpush1.bf16.msra.mxu0 0
  %1467 = vmatprep.mubr.bf16.mxu0 0
  %1468 = vmatmul.mubr.bf16.gmra.mrb[0].mxu0 %v1433
  %v1469 = vpop.f32.mrb[0].mxu0
  %v1470 = vadd.f32 0.0, %v1469
  %v1471 = vpop.f32.mrb[0].mxu0
  %v1472 = vadd.f32 0.0, %v1471
  %v1473 = vpop.f32.mrb[0].mxu0
  %v1474 = vpop.f32.mrb[0].mxu0
  %1475 = vdwg.mxu0
  %v1476 = vadd.f32 %v1073, %v1470
  %v1477 = vadd.f32 %v1074, %v1472
  %v1478 = vrot.slane %v116, 5
  %v1480 = vrot.slane %v183, 4
  %v1482 = vsel %vm187, %v1478, %v1480
  %v1483 = vpack.c.bf16 %v1482, %v1482
  %s1484 = scalar_lea.vmem %s3, 832
  %v1485 = vld [vmem:[%s1484] sm:$0xff]
  %v1486 = vld [vmem:[%s1484 + $0x8] sm:$0xff]
  %v1487 = vld [vmem:[%s1484 + $0x10] sm:$0xff]
  %v1488 = vld [vmem:[%s1484 + $0x18] sm:$0xff]
  %v1489 = vld [vmem:[%s1484 + $0x20] sm:$0xff]
  %v1490 = vld [vmem:[%s1484 + $0x28] sm:$0xff]
  %v1491 = vld [vmem:[%s1484 + $0x30] sm:$0xff]
  %v1492 = vld [vmem:[%s1484 + $0x38] sm:$0xff]
  %v1501 = vunpack.c.l.b16 %v1485
  %v1502 = vunpack.c.h.b16 %v1485
  %v1503 = vunpack.c.l.b16 %v1486
  %v1504 = vunpack.c.h.b16 %v1486
  %v1505 = vunpack.c.l.b16 %v1487
  %v1506 = vunpack.c.h.b16 %v1487
  %v1507 = vunpack.c.l.b16 %v1488
  %v1508 = vunpack.c.h.b16 %v1488
  %v1509 = vunpack.c.l.b16 %v1489
  %v1510 = vunpack.c.h.b16 %v1489
  %v1511 = vunpack.c.l.b16 %v1490
  %v1512 = vunpack.c.h.b16 %v1490
  %v1513 = vunpack.c.l.b16 %v1491
  %v1514 = vunpack.c.h.b16 %v1491
  %v1515 = vunpack.c.l.b16 %v1492
  %v1516 = vunpack.c.h.b16 %v1492
  %v1517 = vpack.c.b16 %v1503, %v1501
  %v1518 = vpack.c.b16 %v1504, %v1502
  %v1519 = vpack.c.b16 %v1507, %v1505
  %v1520 = vpack.c.b16 %v1508, %v1506
  %v1521 = vpack.c.b16 %v1511, %v1509
  %v1522 = vpack.c.b16 %v1512, %v1510
  %v1523 = vpack.c.b16 %v1515, %v1513
  %v1524 = vpack.c.b16 %v1516, %v1514
  %v1534 = vsel %vm297, %v1483, 0
  %1536 = vmatprep.subr.bf16.mxu0 %v1518
  %1537 = vmatpush1.bf16.msra.mxu0 %v1517
  %1538 = vmatprep.subr.bf16.mxu0 %v1520
  %1539 = vmatpush1.bf16.msra.mxu0 %v1519
  %1540 = vmatprep.subr.bf16.mxu0 %v1522
  %1541 = vmatpush1.bf16.msra.mxu0 %v1521
  %1542 = vmatprep.subr.bf16.mxu0 %v1524
  %1543 = vmatpush1.bf16.msra.mxu0 %v1523
  %1544 = vmatprep.subr.bf16.mxu0 0
  %1545 = vmatpush1.bf16.msra.mxu0 0
  %1546 = vmatprep.subr.bf16.mxu0 0
  %1547 = vmatpush1.bf16.msra.mxu0 0
  %1548 = vmatprep.subr.bf16.mxu0 0
  %1549 = vmatpush1.bf16.msra.mxu0 0
  %1550 = vmatprep.subr.bf16.mxu0 0
  %1551 = vmatpush1.bf16.msra.mxu0 0
  %1552 = vmatprep.subr.bf16.mxu0 0
  %1553 = vmatpush1.bf16.msra.mxu0 0
  %1554 = vmatprep.subr.bf16.mxu0 0
  %1555 = vmatpush1.bf16.msra.mxu0 0
  %1556 = vmatprep.subr.bf16.mxu0 0
  %1557 = vmatpush1.bf16.msra.mxu0 0
  %1558 = vmatprep.subr.bf16.mxu0 0
  %1559 = vmatpush1.bf16.msra.mxu0 0
  %1560 = vmatprep.subr.bf16.mxu0 0
  %1561 = vmatpush1.bf16.msra.mxu0 0
  %1562 = vmatprep.subr.bf16.mxu0 0
  %1563 = vmatpush1.bf16.msra.mxu0 0
  %1564 = vmatprep.subr.bf16.mxu0 0
  %1565 = vmatpush1.bf16.msra.mxu0 0
  %1566 = vmatprep.subr.bf16.mxu0 0
  %1567 = vmatpush1.bf16.msra.mxu0 0
  %1568 = vmatprep.mubr.bf16.mxu0 0
  %1569 = vmatmul.mubr.bf16.gmra.mrb[0].mxu0 %v1534
  %v1570 = vpop.f32.mrb[0].mxu0
  %v1571 = vadd.f32 0.0, %v1570
  %v1572 = vpop.f32.mrb[0].mxu0
  %v1573 = vadd.f32 0.0, %v1572
  %v1574 = vpop.f32.mrb[0].mxu0
  %v1575 = vpop.f32.mrb[0].mxu0
  %1576 = vdwg.mxu0
  %v1577 = vadd.f32 %v1173, %v1571
  %v1578 = vadd.f32 %v1174, %v1573
  %v1579 = vrot.slane %v116, 6
  %v1581 = vrot.slane %v183, 5
  %v1583 = vsel %vm187, %v1579, %v1581
  %v1584 = vpack.c.bf16 %v1583, %v1583
  %s1585 = scalar_lea.vmem %s3, 896
  %v1586 = vld [vmem:[%s1585] sm:$0xff]
  %v1587 = vld [vmem:[%s1585 + $0x8] sm:$0xff]
  %v1588 = vld [vmem:[%s1585 + $0x10] sm:$0xff]
  %v1589 = vld [vmem:[%s1585 + $0x18] sm:$0xff]
  %v1590 = vld [vmem:[%s1585 + $0x20] sm:$0xff]
  %v1591 = vld [vmem:[%s1585 + $0x28] sm:$0xff]
  %v1592 = vld [vmem:[%s1585 + $0x30] sm:$0xff]
  %v1593 = vld [vmem:[%s1585 + $0x38] sm:$0xff]
  %v1602 = vunpack.c.l.b16 %v1586
  %v1603 = vunpack.c.h.b16 %v1586
  %v1604 = vunpack.c.l.b16 %v1587
  %v1605 = vunpack.c.h.b16 %v1587
  %v1606 = vunpack.c.l.b16 %v1588
  %v1607 = vunpack.c.h.b16 %v1588
  %v1608 = vunpack.c.l.b16 %v1589
  %v1609 = vunpack.c.h.b16 %v1589
  %v1610 = vunpack.c.l.b16 %v1590
  %v1611 = vunpack.c.h.b16 %v1590
  %v1612 = vunpack.c.l.b16 %v1591
  %v1613 = vunpack.c.h.b16 %v1591
  %v1614 = vunpack.c.l.b16 %v1592
  %v1615 = vunpack.c.h.b16 %v1592
  %v1616 = vunpack.c.l.b16 %v1593
  %v1617 = vunpack.c.h.b16 %v1593
  %v1618 = vpack.c.b16 %v1604, %v1602
  %v1619 = vpack.c.b16 %v1605, %v1603
  %v1620 = vpack.c.b16 %v1608, %v1606
  %v1621 = vpack.c.b16 %v1609, %v1607
  %v1622 = vpack.c.b16 %v1612, %v1610
  %v1623 = vpack.c.b16 %v1613, %v1611
  %v1624 = vpack.c.b16 %v1616, %v1614
  %v1625 = vpack.c.b16 %v1617, %v1615
  %v1635 = vsel %vm297, %v1584, 0
  %1637 = vmatprep.subr.bf16.mxu0 %v1619
  %1638 = vmatpush1.bf16.msra.mxu0 %v1618
  %1639 = vmatprep.subr.bf16.mxu0 %v1621
  %1640 = vmatpush1.bf16.msra.mxu0 %v1620
  %1641 = vmatprep.subr.bf16.mxu0 %v1623
  %1642 = vmatpush1.bf16.msra.mxu0 %v1622
  %1643 = vmatprep.subr.bf16.mxu0 %v1625
  %1644 = vmatpush1.bf16.msra.mxu0 %v1624
  %1645 = vmatprep.subr.bf16.mxu0 0
  %1646 = vmatpush1.bf16.msra.mxu0 0
  %1647 = vmatprep.subr.bf16.mxu0 0
  %1648 = vmatpush1.bf16.msra.mxu0 0
  %1649 = vmatprep.subr.bf16.mxu0 0
  %1650 = vmatpush1.bf16.msra.mxu0 0
  %1651 = vmatprep.subr.bf16.mxu0 0
  %1652 = vmatpush1.bf16.msra.mxu0 0
  %1653 = vmatprep.subr.bf16.mxu0 0
  %1654 = vmatpush1.bf16.msra.mxu0 0
  %1655 = vmatprep.subr.bf16.mxu0 0
  %1656 = vmatpush1.bf16.msra.mxu0 0
  %1657 = vmatprep.subr.bf16.mxu0 0
  %1658 = vmatpush1.bf16.msra.mxu0 0
  %1659 = vmatprep.subr.bf16.mxu0 0
  %1660 = vmatpush1.bf16.msra.mxu0 0
  %1661 = vmatprep.subr.bf16.mxu0 0
  %1662 = vmatpush1.bf16.msra.mxu0 0
  %1663 = vmatprep.subr.bf16.mxu0 0
  %1664 = vmatpush1.bf16.msra.mxu0 0
  %1665 = vmatprep.subr.bf16.mxu0 0
  %1666 = vmatpush1.bf16.msra.mxu0 0
  %1667 = vmatprep.subr.bf16.mxu0 0
  %1668 = vmatpush1.bf16.msra.mxu0 0
  %1669 = vmatprep.mubr.bf16.mxu0 0
  %1670 = vmatmul.mubr.bf16.gmra.mrb[0].mxu0 %v1635
  %v1671 = vpop.f32.mrb[0].mxu0
  %v1672 = vadd.f32 0.0, %v1671
  %v1673 = vpop.f32.mrb[0].mxu0
  %v1674 = vadd.f32 0.0, %v1673
  %v1675 = vpop.f32.mrb[0].mxu0
  %v1676 = vpop.f32.mrb[0].mxu0
  %1677 = vdwg.mxu0
  %v1678 = vadd.f32 %v1274, %v1672
  %v1679 = vadd.f32 %v1275, %v1674
  %v1680 = vrot.slane %v116, 7
  %v1682 = vrot.slane %v183, 6
  %v1684 = vsel %vm187, %v1680, %v1682
  %v1685 = vpack.c.bf16 %v1684, %v1684
  %s1686 = scalar_lea.vmem %s3, 960
  %v1687 = vld [vmem:[%s1686] sm:$0xff]
  %v1688 = vld [vmem:[%s1686 + $0x8] sm:$0xff]
  %v1689 = vld [vmem:[%s1686 + $0x10] sm:$0xff]
  %v1690 = vld [vmem:[%s1686 + $0x18] sm:$0xff]
  %v1691 = vld [vmem:[%s1686 + $0x20] sm:$0xff]
  %v1692 = vld [vmem:[%s1686 + $0x28] sm:$0xff]
  %v1693 = vld [vmem:[%s1686 + $0x30] sm:$0xff]
  %v1694 = vld [vmem:[%s1686 + $0x38] sm:$0xff]
  %v1703 = vunpack.c.l.b16 %v1687
  %v1704 = vunpack.c.h.b16 %v1687
  %v1705 = vunpack.c.l.b16 %v1688
  %v1706 = vunpack.c.h.b16 %v1688
  %v1707 = vunpack.c.l.b16 %v1689
  %v1708 = vunpack.c.h.b16 %v1689
  %v1709 = vunpack.c.l.b16 %v1690
  %v1710 = vunpack.c.h.b16 %v1690
  %v1711 = vunpack.c.l.b16 %v1691
  %v1712 = vunpack.c.h.b16 %v1691
  %v1713 = vunpack.c.l.b16 %v1692
  %v1714 = vunpack.c.h.b16 %v1692
  %v1715 = vunpack.c.l.b16 %v1693
  %v1716 = vunpack.c.h.b16 %v1693
  %v1717 = vunpack.c.l.b16 %v1694
  %v1718 = vunpack.c.h.b16 %v1694
  %v1719 = vpack.c.b16 %v1705, %v1703
  %v1720 = vpack.c.b16 %v1706, %v1704
  %v1721 = vpack.c.b16 %v1709, %v1707
  %v1722 = vpack.c.b16 %v1710, %v1708
  %v1723 = vpack.c.b16 %v1713, %v1711
  %v1724 = vpack.c.b16 %v1714, %v1712
  %v1725 = vpack.c.b16 %v1717, %v1715
  %v1726 = vpack.c.b16 %v1718, %v1716
  %v1736 = vsel %vm297, %v1685, 0
  %1738 = vmatprep.subr.bf16.mxu0 %v1720
  %1739 = vmatpush1.bf16.msra.mxu0 %v1719
  %1740 = vmatprep.subr.bf16.mxu0 %v1722
  %1741 = vmatpush1.bf16.msra.mxu0 %v1721
  %1742 = vmatprep.subr.bf16.mxu0 %v1724
  %1743 = vmatpush1.bf16.msra.mxu0 %v1723
  %1744 = vmatprep.subr.bf16.mxu0 %v1726
  %1745 = vmatpush1.bf16.msra.mxu0 %v1725
  %1746 = vmatprep.subr.bf16.mxu0 0
  %1747 = vmatpush1.bf16.msra.mxu0 0
  %1748 = vmatprep.subr.bf16.mxu0 0
  %1749 = vmatpush1.bf16.msra.mxu0 0
  %1750 = vmatprep.subr.bf16.mxu0 0
  %1751 = vmatpush1.bf16.msra.mxu0 0
  %1752 = vmatprep.subr.bf16.mxu0 0
  %1753 = vmatpush1.bf16.msra.mxu0 0
  %1754 = vmatprep.subr.bf16.mxu0 0
  %1755 = vmatpush1.bf16.msra.mxu0 0
  %1756 = vmatprep.subr.bf16.mxu0 0
  %1757 = vmatpush1.bf16.msra.mxu0 0
  %1758 = vmatprep.subr.bf16.mxu0 0
  %1759 = vmatpush1.bf16.msra.mxu0 0
  %1760 = vmatprep.subr.bf16.mxu0 0
  %1761 = vmatpush1.bf16.msra.mxu0 0
  %1762 = vmatprep.subr.bf16.mxu0 0
  %1763 = vmatpush1.bf16.msra.mxu0 0
  %1764 = vmatprep.subr.bf16.mxu0 0
  %1765 = vmatpush1.bf16.msra.mxu0 0
  %1766 = vmatprep.subr.bf16.mxu0 0
  %1767 = vmatpush1.bf16.msra.mxu0 0
  %1768 = vmatprep.subr.bf16.mxu0 0
  %1769 = vmatpush1.bf16.msra.mxu0 0
  %1770 = vmatprep.mubr.bf16.mxu0 0
  %1771 = vmatmul.mubr.bf16.gmra.mrb[0].mxu0 %v1736
  %v1772 = vpop.f32.mrb[0].mxu0
  %v1773 = vadd.f32 0.0, %v1772
  %v1774 = vpop.f32.mrb[0].mxu0
  %v1775 = vadd.f32 0.0, %v1774
  %v1776 = vpop.f32.mrb[0].mxu0
  %v1777 = vpop.f32.mrb[0].mxu0
  %1778 = vdwg.mxu0
  %v1779 = vadd.f32 %v1375, %v1773
  %v1780 = vadd.f32 %v1376, %v1775
  %v1781 = vadd.f32 %v1476, %v1577
  %v1782 = vadd.f32 %v1477, %v1578
  %v1783 = vadd.f32 %v1678, %v1779
  %v1784 = vadd.f32 %v1679, %v1780
  %v1785 = vadd.f32 %v1781, %v1783
  %v1786 = vadd.f32 %v1782, %v1784
  %v1788 = vlaneseq
  %v1789 = vshrl.u32 %v1788, 7
  %v1790 = vsub.s32 0, %v1789
  %v1791 = vrot.slane %v27, %v1790
  %v1792 = vlaneseq
  %v1793 = vshrl.u32 %v1792, 7
  %v1794 = vsub.s32 1, %v1793
  %v1795 = vrot.slane %v27, %v1794
  %v1798 = vadd.f32 %v1785, %v1791
  %v1799 = vadd.f32 %v1786, %v1795
  %v1800 = vld [vmem:[%s1] sm:$0x3]
  %v1802 = vlaneseq
  %v1803 = vshrl.u32 %v1802, 7
  %v1804 = vsub.s32 0, %v1803
  %v1805 = vrot.slane %v29, %v1804
  %v1806 = vlaneseq
  %v1807 = vshrl.u32 %v1806, 7
  %v1808 = vsub.s32 1, %v1807
  %v1809 = vrot.slane %v29, %v1808
  %vm1812 = vcmask 48128
  %v1814 = vsel %vm1812, %v1800, 0
  %vm1816 = vcmask 1045504
  %v1818 = vsel %vm1816, %v34, 0
  %v1821 = vsel %vm1816, %v35, 0
  %1823 = vmatprep.subr.mxu0 %v1821
  %1824 = vmatpush1.msra.mxu0 %v1818
  %1825 = vmatprep.subr.mxu0 0.0
  %1826 = vmatpush1.msra.mxu0 0.0
  %1827 = vmatprep.subr.mxu0 0.0
  %1828 = vmatpush1.msra.mxu0 0.0
  %1829 = vmatprep.subr.mxu0 0.0
  %1830 = vmatpush1.msra.mxu0 0.0
  %1831 = vmatprep.subr.mxu0 0.0
  %1832 = vmatpush1.msra.mxu0 0.0
  %1833 = vmatprep.subr.mxu0 0.0
  %1834 = vmatpush1.msra.mxu0 0.0
  %1835 = vmatprep.subr.mxu0 0.0
  %1836 = vmatpush1.msra.mxu0 0.0
  %1837 = vmatprep.subr.mxu0 0.0
  %1838 = vmatpush1.msra.mxu0 0.0
  %1839 = vmatprep.subr.mxu0 0.0
  %1840 = vmatpush1.msra.mxu0 0.0
  %1841 = vmatprep.subr.mxu0 0.0
  %1842 = vmatpush1.msra.mxu0 0.0
  %1843 = vmatprep.subr.mxu0 0.0
  %1844 = vmatpush1.msra.mxu0 0.0
  %1845 = vmatprep.subr.mxu0 0.0
  %1846 = vmatpush1.msra.mxu0 0.0
  %1847 = vmatprep.subr.mxu0 0.0
  %1848 = vmatpush1.msra.mxu0 0.0
  %1849 = vmatprep.subr.mxu0 0.0
  %1850 = vmatpush1.msra.mxu0 0.0
  %1851 = vmatprep.subr.mxu0 0.0
  %1852 = vmatpush1.msra.mxu0 0.0
  %1853 = vmatprep.subr.mxu0 0.0
  %1854 = vmatpush1.msra.mxu0 0.0
  %1855 = vmatprep.subr.mxu0 0.0
  %1856 = vmatpush1.msra.mxu0 0.0
  %1857 = vmatprep.subr.mxu0 0.0
  %1858 = vmatpush1.msra.mxu0 0.0
  %1859 = vmatprep.subr.mxu0 0.0
  %1860 = vmatpush1.msra.mxu0 0.0
  %1861 = vmatprep.subr.mxu0 0.0
  %1862 = vmatpush1.msra.mxu0 0.0
  %1863 = vmatprep.subr.mxu0 0.0
  %1864 = vmatpush1.msra.mxu0 0.0
  %1865 = vmatprep.subr.mxu0 0.0
  %1866 = vmatpush1.msra.mxu0 0.0
  %1867 = vmatprep.subr.mxu0 0.0
  %1868 = vmatpush1.msra.mxu0 0.0
  %1869 = vmatprep.subr.mxu0 0.0
  %1870 = vmatpush1.msra.mxu0 0.0
  %1871 = vmatprep.subr.mxu0 0.0
  %1872 = vmatpush1.msra.mxu0 0.0
  %1873 = vmatprep.subr.mxu0 0.0
  %1874 = vmatpush1.msra.mxu0 0.0
  %1875 = vmatprep.subr.mxu0 0.0
  %1876 = vmatpush1.msra.mxu0 0.0
  %1877 = vmatprep.subr.mxu0 0.0
  %1878 = vmatpush1.msra.mxu0 0.0
  %1879 = vmatprep.subr.mxu0 0.0
  %1880 = vmatpush1.msra.mxu0 0.0
  %1881 = vmatprep.subr.mxu0 0.0
  %1882 = vmatpush1.msra.mxu0 0.0
  %1883 = vmatprep.subr.mxu0 0.0
  %1884 = vmatpush1.msra.mxu0 0.0
  %1885 = vmatprep.subr.mxu0 0.0
  %1886 = vmatpush1.msra.mxu0 0.0
  %1887 = vmatprep.mubr.f32.mxu0 0.0
  %1888 = vmatmul.mubr.f32.gmra.mrb[0].mxu0 %v1814
  %v1889 = vpop.f32.mrb[0].mxu0
  %v1890 = vadd.f32 %v1805, %v1889
  %v1891 = vpop.f32.mrb[0].mxu0
  %v1892 = vadd.f32 %v1809, %v1891
  %1893 = vdwg.mxu0
  %v1894 = vmul.f32 %v1798, %v1890
  %v1895 = vmul.f32 %v1799, %v1892
  %v1896 = vpack.c.bf16 %v1894, %v1894
  %v1897 = vpack.c.bf16 %v1895, %v1895
  %v1898 = vld [vmem:[%s4] sm:$0xf]
  %v1899 = vld [vmem:[%s4 + $0x4] sm:$0xf]
  %v1900 = vld [vmem:[%s4 + $0x8] sm:$0xf]
  %v1901 = vld [vmem:[%s4 + $0xc] sm:$0xf]
  %v1902 = vld [vmem:[%s4 + $0x10] sm:$0xf]
  %v1903 = vld [vmem:[%s4 + $0x14] sm:$0xf]
  %v1904 = vld [vmem:[%s4 + $0x18] sm:$0xf]
  %v1905 = vld [vmem:[%s4 + $0x1c] sm:$0xf]
  %v1906 = vld [vmem:[%s4 + $0x20] sm:$0xf]
  %v1907 = vld [vmem:[%s4 + $0x24] sm:$0xf]
  %v1908 = vld [vmem:[%s4 + $0x28] sm:$0xf]
  %v1909 = vld [vmem:[%s4 + $0x2c] sm:$0xf]
  %v1910 = vld [vmem:[%s4 + $0x30] sm:$0xf]
  %v1911 = vld [vmem:[%s4 + $0x34] sm:$0xf]
  %v1912 = vld [vmem:[%s4 + $0x38] sm:$0xf]
  %v1913 = vld [vmem:[%s4 + $0x3c] sm:$0xf]
  %v1914 = vld [vmem:[%s4 + $0x40] sm:$0xf]
  %v1915 = vld [vmem:[%s4 + $0x44] sm:$0xf]
  %v1916 = vld [vmem:[%s4 + $0x48] sm:$0xf]
  %v1917 = vld [vmem:[%s4 + $0x4c] sm:$0xf]
  %v1918 = vld [vmem:[%s4 + $0x50] sm:$0xf]
  %v1919 = vld [vmem:[%s4 + $0x54] sm:$0xf]
  %v1920 = vld [vmem:[%s4 + $0x58] sm:$0xf]
  %v1921 = vld [vmem:[%s4 + $0x5c] sm:$0xf]
  %v1922 = vld [vmem:[%s4 + $0x60] sm:$0xf]
  %v1923 = vld [vmem:[%s4 + $0x64] sm:$0xf]
  %v1924 = vld [vmem:[%s4 + $0x68] sm:$0xf]
  %v1925 = vld [vmem:[%s4 + $0x6c] sm:$0xf]
  %v1926 = vld [vmem:[%s4 + $0x70] sm:$0xf]
  %v1927 = vld [vmem:[%s4 + $0x74] sm:$0xf]
  %v1928 = vld [vmem:[%s4 + $0x78] sm:$0xf]
  %v1929 = vld [vmem:[%s4 + $0x7c] sm:$0xf]
  %v1962 = vunpack.c.l.b16 %v1898
  %v1963 = vunpack.c.l.b16 %v1899
  %v1964 = vunpack.c.l.b16 %v1900
  %v1965 = vunpack.c.l.b16 %v1901
  %v1966 = vunpack.c.l.b16 %v1902
  %v1967 = vunpack.c.l.b16 %v1903
  %v1968 = vunpack.c.l.b16 %v1904
  %v1969 = vunpack.c.l.b16 %v1905
  %v1970 = vunpack.c.l.b16 %v1906
  %v1971 = vunpack.c.l.b16 %v1907
  %v1972 = vunpack.c.l.b16 %v1908
  %v1973 = vunpack.c.l.b16 %v1909
  %v1974 = vunpack.c.l.b16 %v1910
  %v1975 = vunpack.c.l.b16 %v1911
  %v1976 = vunpack.c.l.b16 %v1912
  %v1977 = vunpack.c.l.b16 %v1913
  %v1978 = vunpack.c.l.b16 %v1914
  %v1979 = vunpack.c.l.b16 %v1915
  %v1980 = vunpack.c.l.b16 %v1916
  %v1981 = vunpack.c.l.b16 %v1917
  %v1982 = vunpack.c.l.b16 %v1918
  %v1983 = vunpack.c.l.b16 %v1919
  %v1984 = vunpack.c.l.b16 %v1920
  %v1985 = vunpack.c.l.b16 %v1921
  %v1986 = vunpack.c.l.b16 %v1922
  %v1987 = vunpack.c.l.b16 %v1923
  %v1988 = vunpack.c.l.b16 %v1924
  %v1989 = vunpack.c.l.b16 %v1925
  %v1990 = vunpack.c.l.b16 %v1926
  %v1991 = vunpack.c.l.b16 %v1927
  %v1992 = vunpack.c.l.b16 %v1928
  %v1993 = vunpack.c.l.b16 %v1929
  %v1994 = vpack.c.b16 %v1963, %v1962
  %v1995 = vpack.c.b16 %v1965, %v1964
  %v1996 = vpack.c.b16 %v1967, %v1966
  %v1997 = vpack.c.b16 %v1969, %v1968
  %v1998 = vpack.c.b16 %v1971, %v1970
  %v1999 = vpack.c.b16 %v1973, %v1972
  %v2000 = vpack.c.b16 %v1975, %v1974
  %v2001 = vpack.c.b16 %v1977, %v1976
  %v2002 = vpack.c.b16 %v1979, %v1978
  %v2003 = vpack.c.b16 %v1981, %v1980
  %v2004 = vpack.c.b16 %v1983, %v1982
  %v2005 = vpack.c.b16 %v1985, %v1984
  %v2006 = vpack.c.b16 %v1987, %v1986
  %v2007 = vpack.c.b16 %v1989, %v1988
  %v2008 = vpack.c.b16 %v1991, %v1990
  %v2009 = vpack.c.b16 %v1993, %v1992
  %2026 = vmatprep.subr.bf16.mxu0 0
  %2027 = vmatpush1.bf16.msra.mxu0 %v1994
  %2028 = vmatprep.subr.bf16.mxu0 0
  %2029 = vmatpush1.bf16.msra.mxu0 %v1995
  %2030 = vmatprep.subr.bf16.mxu0 0
  %2031 = vmatpush1.bf16.msra.mxu0 %v1996
  %2032 = vmatprep.subr.bf16.mxu0 0
  %2033 = vmatpush1.bf16.msra.mxu0 %v1997
  %2034 = vmatprep.subr.bf16.mxu0 0
  %2035 = vmatpush1.bf16.msra.mxu0 %v1998
  %2036 = vmatprep.subr.bf16.mxu0 0
  %2037 = vmatpush1.bf16.msra.mxu0 %v1999
  %2038 = vmatprep.subr.bf16.mxu0 0
  %2039 = vmatpush1.bf16.msra.mxu0 %v2000
  %2040 = vmatprep.subr.bf16.mxu0 0
  %2041 = vmatpush1.bf16.msra.mxu0 %v2001
  %2042 = vmatprep.subr.bf16.mxu0 0
  %2043 = vmatpush1.bf16.msra.mxu0 %v2002
  %2044 = vmatprep.subr.bf16.mxu0 0
  %2045 = vmatpush1.bf16.msra.mxu0 %v2003
  %2046 = vmatprep.subr.bf16.mxu0 0
  %2047 = vmatpush1.bf16.msra.mxu0 %v2004
  %2048 = vmatprep.subr.bf16.mxu0 0
  %2049 = vmatpush1.bf16.msra.mxu0 %v2005
  %2050 = vmatprep.subr.bf16.mxu0 0
  %2051 = vmatpush1.bf16.msra.mxu0 %v2006
  %2052 = vmatprep.subr.bf16.mxu0 0
  %2053 = vmatpush1.bf16.msra.mxu0 %v2007
  %2054 = vmatprep.subr.bf16.mxu0 0
  %2055 = vmatpush1.bf16.msra.mxu0 %v2008
  %2056 = vmatprep.subr.bf16.mxu0 0
  %2057 = vmatpush1.bf16.msra.mxu0 %v2009
  %2058 = vmatprep.mubr.bf16.mxu0 %v1897
  %2059 = vmatmul.mubr.bf16.gmra.mrb[0].mxu0 %v1896
  %v2060 = vpop.f32.mrb[0].mxu0
  %v2061 = vadd.f32 %v30, %v2060
  %v2062 = vpop.f32.mrb[0].mxu0
  %v2063 = vpop.f32.mrb[0].mxu0
  %v2064 = vpop.f32.mrb[0].mxu0
  %2065 = vdwg.mxu0
  %v2066 = vpack.c.bf16 %v2061, %v2061
  %v2067 = vld [vmem:[%s5] sm:$0xf]
  %v2068 = vld [vmem:[%s5 + $0x4] sm:$0xf]
  %v2069 = vld [vmem:[%s5 + $0x8] sm:$0xf]
  %v2070 = vld [vmem:[%s5 + $0xc] sm:$0xf]
  %v2071 = vld [vmem:[%s5 + $0x10] sm:$0xf]
  %v2072 = vld [vmem:[%s5 + $0x14] sm:$0xf]
  %v2073 = vld [vmem:[%s5 + $0x18] sm:$0xf]
  %v2074 = vld [vmem:[%s5 + $0x1c] sm:$0xf]
  %v2075 = vld [vmem:[%s5 + $0x20] sm:$0xf]
  %v2076 = vld [vmem:[%s5 + $0x24] sm:$0xf]
  %v2077 = vld [vmem:[%s5 + $0x28] sm:$0xf]
  %v2078 = vld [vmem:[%s5 + $0x2c] sm:$0xf]
  %v2079 = vld [vmem:[%s5 + $0x30] sm:$0xf]
  %v2080 = vld [vmem:[%s5 + $0x34] sm:$0xf]
  %v2081 = vld [vmem:[%s5 + $0x38] sm:$0xf]
  %v2082 = vld [vmem:[%s5 + $0x3c] sm:$0xf]
  %v2099 = vunpack.c.l.b16 %v2067
  %v2100 = vunpack.c.l.b16 %v2068
  %v2101 = vunpack.c.l.b16 %v2069
  %v2102 = vunpack.c.l.b16 %v2070
  %v2103 = vunpack.c.l.b16 %v2071
  %v2104 = vunpack.c.l.b16 %v2072
  %v2105 = vunpack.c.l.b16 %v2073
  %v2106 = vunpack.c.l.b16 %v2074
  %v2107 = vunpack.c.l.b16 %v2075
  %v2108 = vunpack.c.l.b16 %v2076
  %v2109 = vunpack.c.l.b16 %v2077
  %v2110 = vunpack.c.l.b16 %v2078
  %v2111 = vunpack.c.l.b16 %v2079
  %v2112 = vunpack.c.l.b16 %v2080
  %v2113 = vunpack.c.l.b16 %v2081
  %v2114 = vunpack.c.l.b16 %v2082
  %v2115 = vpack.c.b16 %v2100, %v2099
  %v2116 = vpack.c.b16 %v2102, %v2101
  %v2117 = vpack.c.b16 %v2104, %v2103
  %v2118 = vpack.c.b16 %v2106, %v2105
  %v2119 = vpack.c.b16 %v2108, %v2107
  %v2120 = vpack.c.b16 %v2110, %v2109
  %v2121 = vpack.c.b16 %v2112, %v2111
  %v2122 = vpack.c.b16 %v2114, %v2113
  %2131 = vmatprep.subr.bf16.mxu0 0
  %2132 = vmatpush1.bf16.msra.mxu0 %v2115
  %2133 = vmatprep.subr.bf16.mxu0 0
  %2134 = vmatpush1.bf16.msra.mxu0 %v2116
  %2135 = vmatprep.subr.bf16.mxu0 0
  %2136 = vmatpush1.bf16.msra.mxu0 %v2117
  %2137 = vmatprep.subr.bf16.mxu0 0
  %2138 = vmatpush1.bf16.msra.mxu0 %v2118
  %2139 = vmatprep.subr.bf16.mxu0 0
  %2140 = vmatpush1.bf16.msra.mxu0 %v2119
  %2141 = vmatprep.subr.bf16.mxu0 0
  %2142 = vmatpush1.bf16.msra.mxu0 %v2120
  %2143 = vmatprep.subr.bf16.mxu0 0
  %2144 = vmatpush1.bf16.msra.mxu0 %v2121
  %2145 = vmatprep.subr.bf16.mxu0 0
  %2146 = vmatpush1.bf16.msra.mxu0 %v2122
  %2147 = vmatprep.subr.bf16.mxu0 0
  %2148 = vmatpush1.bf16.msra.mxu0 0
  %2149 = vmatprep.subr.bf16.mxu0 0
  %2150 = vmatpush1.bf16.msra.mxu0 0
  %2151 = vmatprep.subr.bf16.mxu0 0
  %2152 = vmatpush1.bf16.msra.mxu0 0
  %2153 = vmatprep.subr.bf16.mxu0 0
  %2154 = vmatpush1.bf16.msra.mxu0 0
  %2155 = vmatprep.subr.bf16.mxu0 0
  %2156 = vmatpush1.bf16.msra.mxu0 0
  %2157 = vmatprep.subr.bf16.mxu0 0
  %2158 = vmatpush1.bf16.msra.mxu0 0
  %2159 = vmatprep.subr.bf16.mxu0 0
  %2160 = vmatpush1.bf16.msra.mxu0 0
  %2161 = vmatprep.subr.bf16.mxu0 0
  %2162 = vmatpush1.bf16.msra.mxu0 0
  %2163 = vmatprep.mubr.bf16.mxu0 0
  %2164 = vmatmul.mubr.bf16.gmra.mrb[0].mxu0 %v2066
  %v2165 = vpop.f32.mrb[0].mxu0
  %v2166 = vadd.f32 %v31, %v2165
  %v2167 = vpop.f32.mrb[0].mxu0
  %v2168 = vpop.f32.mrb[0].mxu0
  %v2169 = vpop.f32.mrb[0].mxu0
  %2170 = vdwg.mxu0
  %v2171 = vmax.f32 %v2166, 0.0
  %v2172 = vmul.f32 %v2171, %v32
  %vm2173 = vcmask 517120
  %v2174 = vsel %vm2173, %v2172, 0.0
  %2175 = vadd.xlane.f32.xlu0 %v2174
  %v2176 = vpop.xlane.xlu0 %2175
  %v2177 = vadd.f32 %v2176, %v33
  %vm2178 = vcmask 1024
  %2179 = vst.msk [vmem:[%s7] sm:$0x3] %vm2178, %v2177
  // Predicated region
  $region30: #{small_disc_net_forward.1} parent=0 // pred_check
    _
  $region31: #{small_disc_net_forward.1} parent=0 // pred_check_branch
    %2181 = sbr.rel (0) target = $region33
  $region32: #{small_disc_net_forward.1} parent=0 // pred_region
    _
  $region33: #{small_disc_net_forward.1} parent=0 // pred_fallthru
    _
  // Predicated region
  $region34: #{small_disc_net_forward.1} parent=0 // pred_check
    _
  $region35: #{small_disc_net_forward.1} parent=0 // pred_check_branch
    %2183 = sbr.rel (0) target = $region37
  $region36: #{small_disc_net_forward.1} parent=0 // pred_region
    _
  $region37: #{small_disc_net_forward.1} parent=0 // pred_fallthru
    _

</llo_original>
